<compile_context>
chip_gen: v7x
topology: tpu7x:2x2x1
jax: 0.10.0
libtpu: 0.0.40
codegen_flags: <defaults>
</compile_context>

<pallas_src>
import jax
import jax.numpy as jnp
import numpy as np
from jax.experimental import pallas as pl
from jax.experimental.pallas import tpu as pltpu  # noqa: F401  (TPU-specific extensions)

B = 2            # batch
S = 8            # sequence length
H = 32           # hidden size
NH = 2           # attention heads
HD = H // NH     # head dim
F = 64           # FFN intermediate size
C = 5            # num intent classes
CPAD = 128       # lane-dense padded classifier width (sliced back to C outside)
L = 2            # encoder layers
VOCAB = 100
EPS = 1e-12
NEG_INF = -1e9


# ----------------------------- shared math helpers -----------------------------
def _layer_norm(x, gamma, beta):
    mu = jnp.mean(x, axis=-1, keepdims=True)
    var = jnp.mean((x - mu) ** 2, axis=-1, keepdims=True)
    return (x - mu) * jax.lax.rsqrt(var + EPS) * gamma + beta


def _gelu(x):
    # TODO(synk): DistilBERT uses exact (erf) GELU; tanh approximation used here
    # (kernel and reference use the same approximation, so the check is exact).
    return 0.5 * x * (1.0 + jnp.tanh(0.7978845608028654 * (x + 0.044715 * x * x * x)))


# ----------------------------- fused Pallas kernel ------------------------------
def _fused_forward_kernel(x_ref, addmask_ref,
                          wqkv_ref, bqkv_ref, wo_ref,
                          wffn1_ref, bffn1_ref, wffn2_ref, vec_ref,
                          wcls_ref, bcls_ref, o_ref):
    """Full encoder (L layers) + mean-pool + classifier head, single grid point.

    wqkv : (L, H, 3H)   fused Q|K|V columns (Q pre-scaled by 1/sqrt(HD))
    bqkv : (L, 1, 3H)   fused Q|K|V bias    (Q bias pre-scaled)
    wo   : (L, H, H)    attention output projection
    wffn1: (L, H, F)  bffn1: (L, 1, F)  wffn2: (L, F, H)
    vec  : (L, 6, 1, H) [bo, ln1_g, ln1_b, ffn_b2, ln2_g, ln2_b]
    wcls : (H, CPAD)  bcls: (1, CPAD)   zero-padded lane-dense classifier head
    """
    x = x_ref[...].reshape(B * S, H)                       # (16, 32), free reshape
    addmask = addmask_ref[...]                             # (B, 1, S), broadcast in add

    for li in range(L):                                    # static (L=2) layer loop
        # ---------------- multi-head self-attention ----------------
        # one lane-dense fused QKV projection per layer
        qkv = jnp.dot(x, wqkv_ref[li],
                      preferred_element_type=jnp.float32) + bqkv_ref[li]   # (B*S, 3H)
        ctx_heads = []
        for h in range(NH):                                # static head loop
            qh = qkv[:, h * HD:(h + 1) * HD].reshape(B, S, HD)
            kh = qkv[:, H + h * HD: H + (h + 1) * HD].reshape(B, S, HD)
            vh = qkv[:, 2 * H + h * HD: 2 * H + (h + 1) * HD].reshape(B, S, HD)
            s = jnp.einsum("bqd,bkd->bqk", qh, kh,
                           preferred_element_type=jnp.float32) + addmask   # (B,S,S)
            m = jnp.max(s, axis=-1, keepdims=True)
            p = jnp.exp(s - m)
            p = p * pl.reciprocal(jnp.sum(p, axis=-1, keepdims=True), approx=True)
            ctx = jnp.einsum("bqk,bkd->bqd", p, vh,
                             preferred_element_type=jnp.float32)
            ctx_heads.append(ctx.reshape(B * S, HD))
        # head concat once, then a single dense output projection
        ctx_all = jnp.concatenate(ctx_heads, axis=-1)                      # (B*S, H)
        attn = jnp.dot(ctx_all, wo_ref[li],
                       preferred_element_type=jnp.float32) + vec_ref[li, 0]
        x = _layer_norm(x + attn, vec_ref[li, 1], vec_ref[li, 2])

        # ---------------- feed-forward ----------------
        ff = _gelu(jnp.dot(x, wffn1_ref[li],
                           preferred_element_type=jnp.float32) + bffn1_ref[li])
        ff = jnp.dot(ff, wffn2_ref[li],
                     preferred_element_type=jnp.float32) + vec_ref[li, 3]
        x = _layer_norm(x + ff, vec_ref[li, 4], vec_ref[li, 5])

    # mean over sequence (unmasked, matching the torch module); dropout(p=0.3) is
    # identity at inference; lane-dense padded classifier head.
    pooled = jnp.mean(x.reshape(B, S, H), axis=1)          # (B, H)
    o_ref[...] = jnp.dot(pooled, wcls_ref[...],
                         preferred_element_type=jnp.float32) + bcls_ref[...]


# ----------------------------- one-time weight packing ----------------------------
def pack_params(params):
    """Pack per-layer tensors into stacked lane-dense slabs. Runs ONCE at load time."""
    scale = 1.0 / (HD ** 0.5)
    wqkv, bqkv, wo, wffn1, bffn1, wffn2, vec = [], [], [], [], [], [], []
    for (wq, bq, wk, bk, wv, bv, wo_l, bo, g1, be1,
         w1, bf1, w2, bf2, g2, be2) in params["layers"]:
        wqkv.append(jnp.concatenate([wq * scale, wk, wv], axis=1))   # (H, 3H)
        bqkv.append(jnp.concatenate([bq * scale, bk, bv], axis=1))   # (1, 3H)
        wo.append(wo_l)
        wffn1.append(w1)
        bffn1.append(bf1)
        wffn2.append(w2)
        vec.append(jnp.stack([bo, g1, be1, bf2, g2, be2]))           # (6, 1, H)
    packed = {
        "wqkv": jnp.stack(wqkv),     # (L, H, 3H)
        "bqkv": jnp.stack(bqkv),     # (L, 1, 3H)
        "wo": jnp.stack(wo),         # (L, H, H)
        "wffn1": jnp.stack(wffn1),   # (L, H, F)
        "bffn1": jnp.stack(bffn1),   # (L, 1, F)
        "wffn2": jnp.stack(wffn2),   # (L, F, H)
        "vec": jnp.stack(vec),       # (L, 6, 1, H)
        "wcls": jnp.zeros((H, CPAD), jnp.float32).at[:, :C].set(params["cls_w"]),
        "bcls": jnp.zeros((1, CPAD), jnp.float32).at[:, :C].set(params["cls_b"]),
        # embedding glue
        "word_emb": params["word_emb"],
        "pos_emb": params["pos_emb"],
        "emb_ln_g": params["emb_ln_g"],
        "emb_ln_b": params["emb_ln_b"],
    }
    return packed


# ----------------------------- glue (plain JAX, jitted) ---------------------------
def _embed(input_ids, packed):
    # TODO(synk): token-id gather + positional embedding + LayerNorm kept as plain
    # JAX glue (embedding-table gather has no clean Pallas equivalent at this scale)
    x = packed["word_emb"][input_ids] + packed["pos_emb"][None, : input_ids.shape[1]]
    return _layer_norm(x, packed["emb_ln_g"], packed["emb_ln_b"])


@jax.jit
def forward(input_ids, attention_mask, packed):
    x = _embed(input_ids, packed)                                       # (B, S, H)
    addmask = jnp.where(attention_mask > 0, 0.0, NEG_INF)
    addmask = addmask.astype(jnp.float32).reshape(B, 1, S)

    logits_pad = pl.pallas_call(
        _fused_forward_kernel,
        out_shape=jax.ShapeDtypeStruct((B, CPAD), jnp.float32),
    )(x, addmask,
      packed["wqkv"], packed["bqkv"], packed["wo"],
      packed["wffn1"], packed["bffn1"], packed["wffn2"], packed["vec"],
      packed["wcls"], packed["bcls"])
    return logits_pad[:, :C]                                            # (B, C)


# ----------------------------- pure-JAX reference ---------------------------------
def ref_forward(input_ids, attention_mask, params):
    x = params["word_emb"][input_ids] + params["pos_emb"][None, : input_ids.shape[1]]
    x = _layer_norm(x, params["emb_ln_g"], params["emb_ln_b"])
    mask4 = attention_mask.astype(jnp.float32)[:, None, None, :]        # (B,1,1,S)
    for lw in params["layers"]:
        (wq, bq, wk, bk, wv, bv, wo, bo, g1, be1,
         w1, bf1, w2, bf2, g2, be2) = lw
        q = x @ wq + bq
        k = x @ wk + bk
        v = x @ wv + bv

        def split(t):
            return t.reshape(B, S, NH, HD).transpose(0, 2, 1, 3)

        qh, kh, vh = split(q), split(k), split(v)
        scores = jnp.einsum("bhqd,bhkd->bhqk", qh, kh) / (HD ** 0.5)
        scores = jnp.where(mask4 > 0.0, scores, NEG_INF)
        p = jax.nn.softmax(scores, axis=-1)
        ctx = jnp.einsum("bhqk,bhkd->bhqd", p, vh).transpose(0, 2, 1, 3).reshape(B, S, H)
        x = _layer_norm(x + ctx @ wo + bo, g1, be1)
        ff = _gelu(x @ w1 + bf1) @ w2 + bf2
        x = _layer_norm(x + ff, g2, be2)
    pooled = x.mean(axis=1)
    return pooled @ params["cls_w"] + params["cls_b"]


# ----------------------------- deterministic init ---------------------------------
def init_params(key, n_layers=L):
    keys = jax.random.split(key, 4 + n_layers)

    def rnd(k, shape):
        return jax.random.normal(k, shape, jnp.float32) * 0.02

    params = {
        "word_emb": rnd(keys[0], (VOCAB, H)),
        "pos_emb": rnd(keys[1], (S, H)),
        "emb_ln_g": jnp.ones((H,), jnp.float32),
        "emb_ln_b": jnp.zeros((H,), jnp.float32),
        "cls_w": rnd(keys[2], (H, C)),
        "cls_b": rnd(keys[3], (1, C)),
        "layers": [],
    }
    for li in range(n_layers):
        ks = jax.random.split(keys[4 + li], 12)
        layer = (
            rnd(ks[0], (H, H)), rnd(ks[1], (1, H)),      # wq, bq
            rnd(ks[2], (H, H)), rnd(ks[3], (1, H)),      # wk, bk
            rnd(ks[4], (H, H)), rnd(ks[5], (1, H)),      # wv, bv
            rnd(ks[6], (H, H)), rnd(ks[7], (1, H)),      # wo, bo
            jnp.ones((1, H), jnp.float32), jnp.zeros((1, H), jnp.float32),   # LN1
            rnd(ks[8], (H, F)), rnd(ks[9], (1, F)),      # ffn w1, b1
            rnd(ks[10], (F, H)), rnd(ks[11], (1, H)),    # ffn w2, b2
            jnp.ones((1, H), jnp.float32), jnp.zeros((1, H), jnp.float32),   # LN2
        )
        params["layers"].append(layer)
    return params


# ----------------------------- main -----------------------------------------------
if __name__ == "__main__":
    key = jax.random.PRNGKey(0)
    k_ids, k_params = jax.random.split(key)
    params = init_params(k_params)

    # one-time (model-load-time) packing, NOT in the per-call path
    packed = jax.tree_util.tree_map(jax.block_until_ready, pack_params(params))

    input_ids = jax.random.randint(k_ids, (B, S), 0, VOCAB, dtype=jnp.int32)
    attention_mask = jnp.array([[1] * S, [1] * (S - 2) + [0] * 2], dtype=jnp.int32)

    logits = forward(input_ids, attention_mask, packed)
    logits = jax.block_until_ready(logits)

    ref = ref_forward(input_ids, attention_mask, params)
    np.testing.assert_allclose(np.asarray(logits), np.asarray(ref),
                               rtol=1e-2, atol=1e-2)
    assert logits.shape == (B, C)
    print("KERNEL_OK")
</pallas_src>

<mosaic_0001>
module attributes {stable_mosaic.version = 11 : i64} {
  func.func @_fused_forward_kernel(%arg0: memref<2x8x32xf32, #tpu.memory_space<vmem>>, %arg1: memref<2x1x8xf32, #tpu.memory_space<vmem>>, %arg2: memref<2x32x96xf32, #tpu.memory_space<vmem>>, %arg3: memref<2x1x96xf32, #tpu.memory_space<vmem>>, %arg4: memref<2x32x32xf32, #tpu.memory_space<vmem>>, %arg5: memref<2x32x64xf32, #tpu.memory_space<vmem>>, %arg6: memref<2x1x64xf32, #tpu.memory_space<vmem>>, %arg7: memref<2x64x32xf32, #tpu.memory_space<vmem>>, %arg8: memref<2x6x1x32xf32, #tpu.memory_space<vmem>>, %arg9: memref<32x128xf32, #tpu.memory_space<vmem>>, %arg10: memref<1x128xf32, #tpu.memory_space<vmem>>, %arg11: memref<2x128xf32, #tpu.memory_space<vmem>>) attributes {dimension_semantics = [], scalar_prefetch = 0 : i64, scratch_operands = 0 : i64, tpu.core_type = #tpu.core_type<tc>} {
    %c0 = arith.constant 0 : index
    %c0_0 = arith.constant 0 : index
    %c0_1 = arith.constant 0 : index
    %0 = vector.load %arg0[%c0, %c0_0, %c0_1] : memref<2x8x32xf32, #tpu.memory_space<vmem>>, vector<2x8x32xf32>
    %1 = vector.shape_cast %0 : vector<2x8x32xf32> to vector<16x32xf32>
    %c0_2 = arith.constant 0 : index
    %c0_3 = arith.constant 0 : index
    %c0_4 = arith.constant 0 : index
    %2 = vector.load %arg1[%c0_2, %c0_3, %c0_4] : memref<2x1x8xf32, #tpu.memory_space<vmem>>, vector<2x1x8xf32>
    %c0_5 = arith.constant 0 : index
    %c0_6 = arith.constant 0 : index
    %c0_7 = arith.constant 0 : index
    %3 = vector.load %arg2[%c0_5, %c0_6, %c0_7] : memref<2x32x96xf32, #tpu.memory_space<vmem>>, vector<1x32x96xf32>
    %4 = vector.shape_cast %3 : vector<1x32x96xf32> to vector<32x96xf32>
    %cst = arith.constant dense<0.000000e+00> : vector<16x96xf32>
    %5 = tpu.matmul %1, %4, %cst {dimension_numbers = #tpu.dot_dimension_numbers<[1], [0], [0], [1], [0, 0, 1, 1], [], []>} : vector<16x32xf32>, vector<32x96xf32>, vector<16x96xf32> -> vector<16x96xf32>
    %c0_8 = arith.constant 0 : index
    %c0_9 = arith.constant 0 : index
    %c0_10 = arith.constant 0 : index
    %6 = vector.load %arg3[%c0_8, %c0_9, %c0_10] : memref<2x1x96xf32, #tpu.memory_space<vmem>>, vector<1x1x96xf32>
    %7 = vector.shape_cast %6 : vector<1x1x96xf32> to vector<1x96xf32>
    %8 = vector.broadcast %7 : vector<1x96xf32> to vector<16x96xf32>
    %9 = arith.addf %5, %8 : vector<16x96xf32>
    %10 = vector.extract_strided_slice %9 {offsets = [0, 0], sizes = [16, 16], strides = [1, 1]} : vector<16x96xf32> to vector<16x16xf32>
    %11 = vector.shape_cast %10 : vector<16x16xf32> to vector<2x8x16xf32>
    %12 = vector.extract_strided_slice %9 {offsets = [0, 32], sizes = [16, 16], strides = [1, 1]} : vector<16x96xf32> to vector<16x16xf32>
    %13 = vector.shape_cast %12 : vector<16x16xf32> to vector<2x8x16xf32>
    %14 = vector.extract_strided_slice %9 {offsets = [0, 64], sizes = [16, 16], strides = [1, 1]} : vector<16x96xf32> to vector<16x16xf32>
    %15 = vector.shape_cast %14 : vector<16x16xf32> to vector<2x8x16xf32>
    "tpu.trace_start"() <{level = 10 : i32, message = "bqd,bkd->bqk"}> : () -> ()
    %cst_11 = arith.constant dense<0.000000e+00> : vector<2x8x8xf32>
    %16 = tpu.matmul %11, %13, %cst_11 {dimension_numbers = #tpu.dot_dimension_numbers<[2], [2], [1], [1], [0, 0, 0, 1, 1, 1], [0], [0]>} : vector<2x8x16xf32>, vector<2x8x16xf32>, vector<2x8x8xf32> -> vector<2x8x8xf32>
    "tpu.trace_stop"() : () -> ()
    %17 = vector.broadcast %2 : vector<2x1x8xf32> to vector<2x8x8xf32>
    %18 = arith.addf %16, %17 : vector<2x8x8xf32>
    %cst_12 = arith.constant dense<0xFF800000> : vector<2x8xf32>
    %19 = vector.multi_reduction <maximumf>, %18, %cst_12 [2] : vector<2x8x8xf32> to vector<2x8xf32>
    %20 = vector.shape_cast %19 : vector<2x8xf32> to vector<2x8x1xf32>
    %21 = vector.broadcast %20 : vector<2x8x1xf32> to vector<2x8x8xf32>
    %22 = arith.subf %18, %21 : vector<2x8x8xf32>
    %23 = math.exp %22 : vector<2x8x8xf32>
    %cst_13 = arith.constant dense<0.000000e+00> : vector<2x8xf32>
    %24 = vector.multi_reduction <add>, %23, %cst_13 [2] : vector<2x8x8xf32> to vector<2x8xf32>
    %25 = vector.shape_cast %24 : vector<2x8xf32> to vector<2x8x1xf32>
    %26 = tpu.reciprocal %25 {approx = true} : vector<2x8x1xf32> -> vector<2x8x1xf32>
    %27 = vector.broadcast %26 : vector<2x8x1xf32> to vector<2x8x8xf32>
    %28 = arith.mulf %23, %27 : vector<2x8x8xf32>
    "tpu.trace_start"() <{level = 10 : i32, message = "bqk,bkd->bqd"}> : () -> ()
    %cst_14 = arith.constant dense<0.000000e+00> : vector<2x8x16xf32>
    %29 = tpu.matmul %28, %15, %cst_14 {dimension_numbers = #tpu.dot_dimension_numbers<[2], [1], [1], [2], [0, 0, 0, 1, 1, 2], [0], [0]>} : vector<2x8x8xf32>, vector<2x8x16xf32>, vector<2x8x16xf32> -> vector<2x8x16xf32>
    "tpu.trace_stop"() : () -> ()
    %30 = vector.shape_cast %29 : vector<2x8x16xf32> to vector<16x16xf32>
    %31 = vector.extract_strided_slice %9 {offsets = [0, 16], sizes = [16, 16], strides = [1, 1]} : vector<16x96xf32> to vector<16x16xf32>
    %32 = vector.shape_cast %31 : vector<16x16xf32> to vector<2x8x16xf32>
    %33 = vector.extract_strided_slice %9 {offsets = [0, 48], sizes = [16, 16], strides = [1, 1]} : vector<16x96xf32> to vector<16x16xf32>
    %34 = vector.shape_cast %33 : vector<16x16xf32> to vector<2x8x16xf32>
    %35 = vector.extract_strided_slice %9 {offsets = [0, 80], sizes = [16, 16], strides = [1, 1]} : vector<16x96xf32> to vector<16x16xf32>
    %36 = vector.shape_cast %35 : vector<16x16xf32> to vector<2x8x16xf32>
    "tpu.trace_start"() <{level = 10 : i32, message = "bqd,bkd->bqk"}> : () -> ()
    %cst_15 = arith.constant dense<0.000000e+00> : vector<2x8x8xf32>
    %37 = tpu.matmul %32, %34, %cst_15 {dimension_numbers = #tpu.dot_dimension_numbers<[2], [2], [1], [1], [0, 0, 0, 1, 1, 1], [0], [0]>} : vector<2x8x16xf32>, vector<2x8x16xf32>, vector<2x8x8xf32> -> vector<2x8x8xf32>
    "tpu.trace_stop"() : () -> ()
    %38 = vector.broadcast %2 : vector<2x1x8xf32> to vector<2x8x8xf32>
    %39 = arith.addf %37, %38 : vector<2x8x8xf32>
    %cst_16 = arith.constant dense<0xFF800000> : vector<2x8xf32>
    %40 = vector.multi_reduction <maximumf>, %39, %cst_16 [2] : vector<2x8x8xf32> to vector<2x8xf32>
    %41 = vector.shape_cast %40 : vector<2x8xf32> to vector<2x8x1xf32>
    %42 = vector.broadcast %41 : vector<2x8x1xf32> to vector<2x8x8xf32>
    %43 = arith.subf %39, %42 : vector<2x8x8xf32>
    %44 = math.exp %43 : vector<2x8x8xf32>
    %cst_17 = arith.constant dense<0.000000e+00> : vector<2x8xf32>
    %45 = vector.multi_reduction <add>, %44, %cst_17 [2] : vector<2x8x8xf32> to vector<2x8xf32>
    %46 = vector.shape_cast %45 : vector<2x8xf32> to vector<2x8x1xf32>
    %47 = tpu.reciprocal %46 {approx = true} : vector<2x8x1xf32> -> vector<2x8x1xf32>
    %48 = vector.broadcast %47 : vector<2x8x1xf32> to vector<2x8x8xf32>
    %49 = arith.mulf %44, %48 : vector<2x8x8xf32>
    "tpu.trace_start"() <{level = 10 : i32, message = "bqk,bkd->bqd"}> : () -> ()
    %cst_18 = arith.constant dense<0.000000e+00> : vector<2x8x16xf32>
    %50 = tpu.matmul %49, %36, %cst_18 {dimension_numbers = #tpu.dot_dimension_numbers<[2], [1], [1], [2], [0, 0, 0, 1, 1, 2], [0], [0]>} : vector<2x8x8xf32>, vector<2x8x16xf32>, vector<2x8x16xf32> -> vector<2x8x16xf32>
    "tpu.trace_stop"() : () -> ()
    %51 = vector.shape_cast %50 : vector<2x8x16xf32> to vector<16x16xf32>
    %52 = tpu.concatenate %30, %51 in 1 : vector<16x16xf32>, vector<16x16xf32> -> vector<16x32xf32>
    %c0_19 = arith.constant 0 : index
    %c0_20 = arith.constant 0 : index
    %c0_21 = arith.constant 0 : index
    %53 = vector.load %arg4[%c0_19, %c0_20, %c0_21] : memref<2x32x32xf32, #tpu.memory_space<vmem>>, vector<1x32x32xf32>
    %54 = vector.shape_cast %53 : vector<1x32x32xf32> to vector<32x32xf32>
    %cst_22 = arith.constant dense<0.000000e+00> : vector<16x32xf32>
    %55 = tpu.matmul %52, %54, %cst_22 {dimension_numbers = #tpu.dot_dimension_numbers<[1], [0], [0], [1], [0, 0, 1, 1], [], []>} : vector<16x32xf32>, vector<32x32xf32>, vector<16x32xf32> -> vector<16x32xf32>
    %c0_23 = arith.constant 0 : index
    %c0_24 = arith.constant 0 : index
    %c0_25 = arith.constant 0 : index
    %c0_26 = arith.constant 0 : index
    %56 = vector.load %arg8[%c0_23, %c0_24, %c0_25, %c0_26] : memref<2x6x1x32xf32, #tpu.memory_space<vmem>>, vector<1x1x1x32xf32>
    %57 = vector.shape_cast %56 : vector<1x1x1x32xf32> to vector<1x32xf32>
    %58 = vector.broadcast %57 : vector<1x32xf32> to vector<16x32xf32>
    %59 = arith.addf %55, %58 : vector<16x32xf32>
    %60 = arith.addf %1, %59 : vector<16x32xf32>
    %c0_27 = arith.constant 0 : index
    %c1 = arith.constant 1 : index
    %c0_28 = arith.constant 0 : index
    %c0_29 = arith.constant 0 : index
    %61 = vector.load %arg8[%c0_27, %c1, %c0_28, %c0_29] : memref<2x6x1x32xf32, #tpu.memory_space<vmem>>, vector<1x1x1x32xf32>
    %62 = vector.shape_cast %61 : vector<1x1x1x32xf32> to vector<1x32xf32>
    %c0_30 = arith.constant 0 : index
    %c2 = arith.constant 2 : index
    %c0_31 = arith.constant 0 : index
    %c0_32 = arith.constant 0 : index
    %63 = vector.load %arg8[%c0_30, %c2, %c0_31, %c0_32] : memref<2x6x1x32xf32, #tpu.memory_space<vmem>>, vector<1x1x1x32xf32>
    %64 = vector.shape_cast %63 : vector<1x1x1x32xf32> to vector<1x32xf32>
    %cst_33 = arith.constant dense<0.000000e+00> : vector<16xf32>
    %65 = vector.multi_reduction <add>, %60, %cst_33 [1] : vector<16x32xf32> to vector<16xf32>
    %66 = vector.shape_cast %65 : vector<16xf32> to vector<16x1xf32>
    %cst_34 = arith.constant 3.200000e+01 : f32
    %67 = vector.broadcast %cst_34 : f32 to vector<16x1xf32>
    %68 = arith.divf %66, %67 : vector<16x1xf32>
    %69 = vector.broadcast %68 : vector<16x1xf32> to vector<16x32xf32>
    %70 = arith.subf %60, %69 : vector<16x32xf32>
    %71 = arith.mulf %70, %70 : vector<16x32xf32>
    %cst_35 = arith.constant dense<0.000000e+00> : vector<16xf32>
    %72 = vector.multi_reduction <add>, %71, %cst_35 [1] : vector<16x32xf32> to vector<16xf32>
    %73 = vector.shape_cast %72 : vector<16xf32> to vector<16x1xf32>
    %cst_36 = arith.constant 3.200000e+01 : f32
    %74 = vector.broadcast %cst_36 : f32 to vector<16x1xf32>
    %75 = arith.divf %73, %74 : vector<16x1xf32>
    %76 = vector.broadcast %68 : vector<16x1xf32> to vector<16x32xf32>
    %77 = arith.subf %60, %76 : vector<16x32xf32>
    %cst_37 = arith.constant 9.99999996E-13 : f32
    %78 = vector.broadcast %cst_37 : f32 to vector<16x1xf32>
    %79 = arith.addf %75, %78 : vector<16x1xf32>
    %80 = math.rsqrt %79 : vector<16x1xf32>
    %81 = vector.broadcast %80 : vector<16x1xf32> to vector<16x32xf32>
    %82 = arith.mulf %77, %81 : vector<16x32xf32>
    %83 = vector.broadcast %62 : vector<1x32xf32> to vector<16x32xf32>
    %84 = arith.mulf %82, %83 : vector<16x32xf32>
    %85 = vector.broadcast %64 : vector<1x32xf32> to vector<16x32xf32>
    %86 = arith.addf %84, %85 : vector<16x32xf32>
    %c0_38 = arith.constant 0 : index
    %c0_39 = arith.constant 0 : index
    %c0_40 = arith.constant 0 : index
    %87 = vector.load %arg5[%c0_38, %c0_39, %c0_40] : memref<2x32x64xf32, #tpu.memory_space<vmem>>, vector<1x32x64xf32>
    %88 = vector.shape_cast %87 : vector<1x32x64xf32> to vector<32x64xf32>
    %cst_41 = arith.constant dense<0.000000e+00> : vector<16x64xf32>
    %89 = tpu.matmul %86, %88, %cst_41 {dimension_numbers = #tpu.dot_dimension_numbers<[1], [0], [0], [1], [0, 0, 1, 1], [], []>} : vector<16x32xf32>, vector<32x64xf32>, vector<16x64xf32> -> vector<16x64xf32>
    %c0_42 = arith.constant 0 : index
    %c0_43 = arith.constant 0 : index
    %c0_44 = arith.constant 0 : index
    %90 = vector.load %arg6[%c0_42, %c0_43, %c0_44] : memref<2x1x64xf32, #tpu.memory_space<vmem>>, vector<1x1x64xf32>
    %91 = vector.shape_cast %90 : vector<1x1x64xf32> to vector<1x64xf32>
    %92 = vector.broadcast %91 : vector<1x64xf32> to vector<16x64xf32>
    %93 = arith.addf %89, %92 : vector<16x64xf32>
    %cst_45 = arith.constant 5.000000e-01 : f32
    %94 = vector.broadcast %cst_45 : f32 to vector<16x64xf32>
    %95 = arith.mulf %94, %93 : vector<16x64xf32>
    %cst_46 = arith.constant 4.471500e-02 : f32
    %96 = vector.broadcast %cst_46 : f32 to vector<16x64xf32>
    %97 = arith.mulf %96, %93 : vector<16x64xf32>
    %98 = arith.mulf %97, %93 : vector<16x64xf32>
    %99 = arith.mulf %98, %93 : vector<16x64xf32>
    %100 = arith.addf %93, %99 : vector<16x64xf32>
    %cst_47 = arith.constant 0.797884583 : f32
    %101 = vector.broadcast %cst_47 : f32 to vector<16x64xf32>
    %102 = arith.mulf %101, %100 : vector<16x64xf32>
    %103 = math.tanh %102 : vector<16x64xf32>
    %cst_48 = arith.constant 1.000000e+00 : f32
    %104 = vector.broadcast %cst_48 : f32 to vector<16x64xf32>
    %105 = arith.addf %104, %103 : vector<16x64xf32>
    %106 = arith.mulf %95, %105 : vector<16x64xf32>
    %c0_49 = arith.constant 0 : index
    %c0_50 = arith.constant 0 : index
    %c0_51 = arith.constant 0 : index
    %107 = vector.load %arg7[%c0_49, %c0_50, %c0_51] : memref<2x64x32xf32, #tpu.memory_space<vmem>>, vector<1x64x32xf32>
    %108 = vector.shape_cast %107 : vector<1x64x32xf32> to vector<64x32xf32>
    %cst_52 = arith.constant dense<0.000000e+00> : vector<16x32xf32>
    %109 = tpu.matmul %106, %108, %cst_52 {dimension_numbers = #tpu.dot_dimension_numbers<[1], [0], [0], [1], [0, 0, 1, 1], [], []>} : vector<16x64xf32>, vector<64x32xf32>, vector<16x32xf32> -> vector<16x32xf32>
    %c0_53 = arith.constant 0 : index
    %c3 = arith.constant 3 : index
    %c0_54 = arith.constant 0 : index
    %c0_55 = arith.constant 0 : index
    %110 = vector.load %arg8[%c0_53, %c3, %c0_54, %c0_55] : memref<2x6x1x32xf32, #tpu.memory_space<vmem>>, vector<1x1x1x32xf32>
    %111 = vector.shape_cast %110 : vector<1x1x1x32xf32> to vector<1x32xf32>
    %112 = vector.broadcast %111 : vector<1x32xf32> to vector<16x32xf32>
    %113 = arith.addf %109, %112 : vector<16x32xf32>
    %114 = arith.addf %86, %113 : vector<16x32xf32>
    %c0_56 = arith.constant 0 : index
    %c4 = arith.constant 4 : index
    %c0_57 = arith.constant 0 : index
    %c0_58 = arith.constant 0 : index
    %115 = vector.load %arg8[%c0_56, %c4, %c0_57, %c0_58] : memref<2x6x1x32xf32, #tpu.memory_space<vmem>>, vector<1x1x1x32xf32>
    %116 = vector.shape_cast %115 : vector<1x1x1x32xf32> to vector<1x32xf32>
    %c0_59 = arith.constant 0 : index
    %c5 = arith.constant 5 : index
    %c0_60 = arith.constant 0 : index
    %c0_61 = arith.constant 0 : index
    %117 = vector.load %arg8[%c0_59, %c5, %c0_60, %c0_61] : memref<2x6x1x32xf32, #tpu.memory_space<vmem>>, vector<1x1x1x32xf32>
    %118 = vector.shape_cast %117 : vector<1x1x1x32xf32> to vector<1x32xf32>
    %cst_62 = arith.constant dense<0.000000e+00> : vector<16xf32>
    %119 = vector.multi_reduction <add>, %114, %cst_62 [1] : vector<16x32xf32> to vector<16xf32>
    %120 = vector.shape_cast %119 : vector<16xf32> to vector<16x1xf32>
    %cst_63 = arith.constant 3.200000e+01 : f32
    %121 = vector.broadcast %cst_63 : f32 to vector<16x1xf32>
    %122 = arith.divf %120, %121 : vector<16x1xf32>
    %123 = vector.broadcast %122 : vector<16x1xf32> to vector<16x32xf32>
    %124 = arith.subf %114, %123 : vector<16x32xf32>
    %125 = arith.mulf %124, %124 : vector<16x32xf32>
    %cst_64 = arith.constant dense<0.000000e+00> : vector<16xf32>
    %126 = vector.multi_reduction <add>, %125, %cst_64 [1] : vector<16x32xf32> to vector<16xf32>
    %127 = vector.shape_cast %126 : vector<16xf32> to vector<16x1xf32>
    %cst_65 = arith.constant 3.200000e+01 : f32
    %128 = vector.broadcast %cst_65 : f32 to vector<16x1xf32>
    %129 = arith.divf %127, %128 : vector<16x1xf32>
    %130 = vector.broadcast %122 : vector<16x1xf32> to vector<16x32xf32>
    %131 = arith.subf %114, %130 : vector<16x32xf32>
    %cst_66 = arith.constant 9.99999996E-13 : f32
    %132 = vector.broadcast %cst_66 : f32 to vector<16x1xf32>
    %133 = arith.addf %129, %132 : vector<16x1xf32>
    %134 = math.rsqrt %133 : vector<16x1xf32>
    %135 = vector.broadcast %134 : vector<16x1xf32> to vector<16x32xf32>
    %136 = arith.mulf %131, %135 : vector<16x32xf32>
    %137 = vector.broadcast %116 : vector<1x32xf32> to vector<16x32xf32>
    %138 = arith.mulf %136, %137 : vector<16x32xf32>
    %139 = vector.broadcast %118 : vector<1x32xf32> to vector<16x32xf32>
    %140 = arith.addf %138, %139 : vector<16x32xf32>
    %c1_67 = arith.constant 1 : index
    %c0_68 = arith.constant 0 : index
    %c0_69 = arith.constant 0 : index
    %141 = vector.load %arg2[%c1_67, %c0_68, %c0_69] : memref<2x32x96xf32, #tpu.memory_space<vmem>>, vector<1x32x96xf32>
    %142 = vector.shape_cast %141 : vector<1x32x96xf32> to vector<32x96xf32>
    %cst_70 = arith.constant dense<0.000000e+00> : vector<16x96xf32>
    %143 = tpu.matmul %140, %142, %cst_70 {dimension_numbers = #tpu.dot_dimension_numbers<[1], [0], [0], [1], [0, 0, 1, 1], [], []>} : vector<16x32xf32>, vector<32x96xf32>, vector<16x96xf32> -> vector<16x96xf32>
    %c1_71 = arith.constant 1 : index
    %c0_72 = arith.constant 0 : index
    %c0_73 = arith.constant 0 : index
    %144 = vector.load %arg3[%c1_71, %c0_72, %c0_73] : memref<2x1x96xf32, #tpu.memory_space<vmem>>, vector<1x1x96xf32>
    %145 = vector.shape_cast %144 : vector<1x1x96xf32> to vector<1x96xf32>
    %146 = vector.broadcast %145 : vector<1x96xf32> to vector<16x96xf32>
    %147 = arith.addf %143, %146 : vector<16x96xf32>
    %148 = vector.extract_strided_slice %147 {offsets = [0, 0], sizes = [16, 16], strides = [1, 1]} : vector<16x96xf32> to vector<16x16xf32>
    %149 = vector.shape_cast %148 : vector<16x16xf32> to vector<2x8x16xf32>
    %150 = vector.extract_strided_slice %147 {offsets = [0, 32], sizes = [16, 16], strides = [1, 1]} : vector<16x96xf32> to vector<16x16xf32>
    %151 = vector.shape_cast %150 : vector<16x16xf32> to vector<2x8x16xf32>
    %152 = vector.extract_strided_slice %147 {offsets = [0, 64], sizes = [16, 16], strides = [1, 1]} : vector<16x96xf32> to vector<16x16xf32>
    %153 = vector.shape_cast %152 : vector<16x16xf32> to vector<2x8x16xf32>
    "tpu.trace_start"() <{level = 10 : i32, message = "bqd,bkd->bqk"}> : () -> ()
    %cst_74 = arith.constant dense<0.000000e+00> : vector<2x8x8xf32>
    %154 = tpu.matmul %149, %151, %cst_74 {dimension_numbers = #tpu.dot_dimension_numbers<[2], [2], [1], [1], [0, 0, 0, 1, 1, 1], [0], [0]>} : vector<2x8x16xf32>, vector<2x8x16xf32>, vector<2x8x8xf32> -> vector<2x8x8xf32>
    "tpu.trace_stop"() : () -> ()
    %155 = vector.broadcast %2 : vector<2x1x8xf32> to vector<2x8x8xf32>
    %156 = arith.addf %154, %155 : vector<2x8x8xf32>
    %cst_75 = arith.constant dense<0xFF800000> : vector<2x8xf32>
    %157 = vector.multi_reduction <maximumf>, %156, %cst_75 [2] : vector<2x8x8xf32> to vector<2x8xf32>
    %158 = vector.shape_cast %157 : vector<2x8xf32> to vector<2x8x1xf32>
    %159 = vector.broadcast %158 : vector<2x8x1xf32> to vector<2x8x8xf32>
    %160 = arith.subf %156, %159 : vector<2x8x8xf32>
    %161 = math.exp %160 : vector<2x8x8xf32>
    %cst_76 = arith.constant dense<0.000000e+00> : vector<2x8xf32>
    %162 = vector.multi_reduction <add>, %161, %cst_76 [2] : vector<2x8x8xf32> to vector<2x8xf32>
    %163 = vector.shape_cast %162 : vector<2x8xf32> to vector<2x8x1xf32>
    %164 = tpu.reciprocal %163 {approx = true} : vector<2x8x1xf32> -> vector<2x8x1xf32>
    %165 = vector.broadcast %164 : vector<2x8x1xf32> to vector<2x8x8xf32>
    %166 = arith.mulf %161, %165 : vector<2x8x8xf32>
    "tpu.trace_start"() <{level = 10 : i32, message = "bqk,bkd->bqd"}> : () -> ()
    %cst_77 = arith.constant dense<0.000000e+00> : vector<2x8x16xf32>
    %167 = tpu.matmul %166, %153, %cst_77 {dimension_numbers = #tpu.dot_dimension_numbers<[2], [1], [1], [2], [0, 0, 0, 1, 1, 2], [0], [0]>} : vector<2x8x8xf32>, vector<2x8x16xf32>, vector<2x8x16xf32> -> vector<2x8x16xf32>
    "tpu.trace_stop"() : () -> ()
    %168 = vector.shape_cast %167 : vector<2x8x16xf32> to vector<16x16xf32>
    %169 = vector.extract_strided_slice %147 {offsets = [0, 16], sizes = [16, 16], strides = [1, 1]} : vector<16x96xf32> to vector<16x16xf32>
    %170 = vector.shape_cast %169 : vector<16x16xf32> to vector<2x8x16xf32>
    %171 = vector.extract_strided_slice %147 {offsets = [0, 48], sizes = [16, 16], strides = [1, 1]} : vector<16x96xf32> to vector<16x16xf32>
    %172 = vector.shape_cast %171 : vector<16x16xf32> to vector<2x8x16xf32>
    %173 = vector.extract_strided_slice %147 {offsets = [0, 80], sizes = [16, 16], strides = [1, 1]} : vector<16x96xf32> to vector<16x16xf32>
    %174 = vector.shape_cast %173 : vector<16x16xf32> to vector<2x8x16xf32>
    "tpu.trace_start"() <{level = 10 : i32, message = "bqd,bkd->bqk"}> : () -> ()
    %cst_78 = arith.constant dense<0.000000e+00> : vector<2x8x8xf32>
    %175 = tpu.matmul %170, %172, %cst_78 {dimension_numbers = #tpu.dot_dimension_numbers<[2], [2], [1], [1], [0, 0, 0, 1, 1, 1], [0], [0]>} : vector<2x8x16xf32>, vector<2x8x16xf32>, vector<2x8x8xf32> -> vector<2x8x8xf32>
    "tpu.trace_stop"() : () -> ()
    %176 = vector.broadcast %2 : vector<2x1x8xf32> to vector<2x8x8xf32>
    %177 = arith.addf %175, %176 : vector<2x8x8xf32>
    %cst_79 = arith.constant dense<0xFF800000> : vector<2x8xf32>
    %178 = vector.multi_reduction <maximumf>, %177, %cst_79 [2] : vector<2x8x8xf32> to vector<2x8xf32>
    %179 = vector.shape_cast %178 : vector<2x8xf32> to vector<2x8x1xf32>
    %180 = vector.broadcast %179 : vector<2x8x1xf32> to vector<2x8x8xf32>
    %181 = arith.subf %177, %180 : vector<2x8x8xf32>
    %182 = math.exp %181 : vector<2x8x8xf32>
    %cst_80 = arith.constant dense<0.000000e+00> : vector<2x8xf32>
    %183 = vector.multi_reduction <add>, %182, %cst_80 [2] : vector<2x8x8xf32> to vector<2x8xf32>
    %184 = vector.shape_cast %183 : vector<2x8xf32> to vector<2x8x1xf32>
    %185 = tpu.reciprocal %184 {approx = true} : vector<2x8x1xf32> -> vector<2x8x1xf32>
    %186 = vector.broadcast %185 : vector<2x8x1xf32> to vector<2x8x8xf32>
    %187 = arith.mulf %182, %186 : vector<2x8x8xf32>
    "tpu.trace_start"() <{level = 10 : i32, message = "bqk,bkd->bqd"}> : () -> ()
    %cst_81 = arith.constant dense<0.000000e+00> : vector<2x8x16xf32>
    %188 = tpu.matmul %187, %174, %cst_81 {dimension_numbers = #tpu.dot_dimension_numbers<[2], [1], [1], [2], [0, 0, 0, 1, 1, 2], [0], [0]>} : vector<2x8x8xf32>, vector<2x8x16xf32>, vector<2x8x16xf32> -> vector<2x8x16xf32>
    "tpu.trace_stop"() : () -> ()
    %189 = vector.shape_cast %188 : vector<2x8x16xf32> to vector<16x16xf32>
    %190 = tpu.concatenate %168, %189 in 1 : vector<16x16xf32>, vector<16x16xf32> -> vector<16x32xf32>
    %c1_82 = arith.constant 1 : index
    %c0_83 = arith.constant 0 : index
    %c0_84 = arith.constant 0 : index
    %191 = vector.load %arg4[%c1_82, %c0_83, %c0_84] : memref<2x32x32xf32, #tpu.memory_space<vmem>>, vector<1x32x32xf32>
    %192 = vector.shape_cast %191 : vector<1x32x32xf32> to vector<32x32xf32>
    %cst_85 = arith.constant dense<0.000000e+00> : vector<16x32xf32>
    %193 = tpu.matmul %190, %192, %cst_85 {dimension_numbers = #tpu.dot_dimension_numbers<[1], [0], [0], [1], [0, 0, 1, 1], [], []>} : vector<16x32xf32>, vector<32x32xf32>, vector<16x32xf32> -> vector<16x32xf32>
    %c1_86 = arith.constant 1 : index
    %c0_87 = arith.constant 0 : index
    %c0_88 = arith.constant 0 : index
    %c0_89 = arith.constant 0 : index
    %194 = vector.load %arg8[%c1_86, %c0_87, %c0_88, %c0_89] : memref<2x6x1x32xf32, #tpu.memory_space<vmem>>, vector<1x1x1x32xf32>
    %195 = vector.shape_cast %194 : vector<1x1x1x32xf32> to vector<1x32xf32>
    %196 = vector.broadcast %195 : vector<1x32xf32> to vector<16x32xf32>
    %197 = arith.addf %193, %196 : vector<16x32xf32>
    %198 = arith.addf %140, %197 : vector<16x32xf32>
    %c1_90 = arith.constant 1 : index
    %c1_91 = arith.constant 1 : index
    %c0_92 = arith.constant 0 : index
    %c0_93 = arith.constant 0 : index
    %199 = vector.load %arg8[%c1_90, %c1_91, %c0_92, %c0_93] : memref<2x6x1x32xf32, #tpu.memory_space<vmem>>, vector<1x1x1x32xf32>
    %200 = vector.shape_cast %199 : vector<1x1x1x32xf32> to vector<1x32xf32>
    %c1_94 = arith.constant 1 : index
    %c2_95 = arith.constant 2 : index
    %c0_96 = arith.constant 0 : index
    %c0_97 = arith.constant 0 : index
    %201 = vector.load %arg8[%c1_94, %c2_95, %c0_96, %c0_97] : memref<2x6x1x32xf32, #tpu.memory_space<vmem>>, vector<1x1x1x32xf32>
    %202 = vector.shape_cast %201 : vector<1x1x1x32xf32> to vector<1x32xf32>
    %cst_98 = arith.constant dense<0.000000e+00> : vector<16xf32>
    %203 = vector.multi_reduction <add>, %198, %cst_98 [1] : vector<16x32xf32> to vector<16xf32>
    %204 = vector.shape_cast %203 : vector<16xf32> to vector<16x1xf32>
    %cst_99 = arith.constant 3.200000e+01 : f32
    %205 = vector.broadcast %cst_99 : f32 to vector<16x1xf32>
    %206 = arith.divf %204, %205 : vector<16x1xf32>
    %207 = vector.broadcast %206 : vector<16x1xf32> to vector<16x32xf32>
    %208 = arith.subf %198, %207 : vector<16x32xf32>
    %209 = arith.mulf %208, %208 : vector<16x32xf32>
    %cst_100 = arith.constant dense<0.000000e+00> : vector<16xf32>
    %210 = vector.multi_reduction <add>, %209, %cst_100 [1] : vector<16x32xf32> to vector<16xf32>
    %211 = vector.shape_cast %210 : vector<16xf32> to vector<16x1xf32>
    %cst_101 = arith.constant 3.200000e+01 : f32
    %212 = vector.broadcast %cst_101 : f32 to vector<16x1xf32>
    %213 = arith.divf %211, %212 : vector<16x1xf32>
    %214 = vector.broadcast %206 : vector<16x1xf32> to vector<16x32xf32>
    %215 = arith.subf %198, %214 : vector<16x32xf32>
    %cst_102 = arith.constant 9.99999996E-13 : f32
    %216 = vector.broadcast %cst_102 : f32 to vector<16x1xf32>
    %217 = arith.addf %213, %216 : vector<16x1xf32>
    %218 = math.rsqrt %217 : vector<16x1xf32>
    %219 = vector.broadcast %218 : vector<16x1xf32> to vector<16x32xf32>
    %220 = arith.mulf %215, %219 : vector<16x32xf32>
    %221 = vector.broadcast %200 : vector<1x32xf32> to vector<16x32xf32>
    %222 = arith.mulf %220, %221 : vector<16x32xf32>
    %223 = vector.broadcast %202 : vector<1x32xf32> to vector<16x32xf32>
    %224 = arith.addf %222, %223 : vector<16x32xf32>
    %c1_103 = arith.constant 1 : index
    %c0_104 = arith.constant 0 : index
    %c0_105 = arith.constant 0 : index
    %225 = vector.load %arg5[%c1_103, %c0_104, %c0_105] : memref<2x32x64xf32, #tpu.memory_space<vmem>>, vector<1x32x64xf32>
    %226 = vector.shape_cast %225 : vector<1x32x64xf32> to vector<32x64xf32>
    %cst_106 = arith.constant dense<0.000000e+00> : vector<16x64xf32>
    %227 = tpu.matmul %224, %226, %cst_106 {dimension_numbers = #tpu.dot_dimension_numbers<[1], [0], [0], [1], [0, 0, 1, 1], [], []>} : vector<16x32xf32>, vector<32x64xf32>, vector<16x64xf32> -> vector<16x64xf32>
    %c1_107 = arith.constant 1 : index
    %c0_108 = arith.constant 0 : index
    %c0_109 = arith.constant 0 : index
    %228 = vector.load %arg6[%c1_107, %c0_108, %c0_109] : memref<2x1x64xf32, #tpu.memory_space<vmem>>, vector<1x1x64xf32>
    %229 = vector.shape_cast %228 : vector<1x1x64xf32> to vector<1x64xf32>
    %230 = vector.broadcast %229 : vector<1x64xf32> to vector<16x64xf32>
    %231 = arith.addf %227, %230 : vector<16x64xf32>
    %cst_110 = arith.constant 5.000000e-01 : f32
    %232 = vector.broadcast %cst_110 : f32 to vector<16x64xf32>
    %233 = arith.mulf %232, %231 : vector<16x64xf32>
    %cst_111 = arith.constant 4.471500e-02 : f32
    %234 = vector.broadcast %cst_111 : f32 to vector<16x64xf32>
    %235 = arith.mulf %234, %231 : vector<16x64xf32>
    %236 = arith.mulf %235, %231 : vector<16x64xf32>
    %237 = arith.mulf %236, %231 : vector<16x64xf32>
    %238 = arith.addf %231, %237 : vector<16x64xf32>
    %cst_112 = arith.constant 0.797884583 : f32
    %239 = vector.broadcast %cst_112 : f32 to vector<16x64xf32>
    %240 = arith.mulf %239, %238 : vector<16x64xf32>
    %241 = math.tanh %240 : vector<16x64xf32>
    %cst_113 = arith.constant 1.000000e+00 : f32
    %242 = vector.broadcast %cst_113 : f32 to vector<16x64xf32>
    %243 = arith.addf %242, %241 : vector<16x64xf32>
    %244 = arith.mulf %233, %243 : vector<16x64xf32>
    %c1_114 = arith.constant 1 : index
    %c0_115 = arith.constant 0 : index
    %c0_116 = arith.constant 0 : index
    %245 = vector.load %arg7[%c1_114, %c0_115, %c0_116] : memref<2x64x32xf32, #tpu.memory_space<vmem>>, vector<1x64x32xf32>
    %246 = vector.shape_cast %245 : vector<1x64x32xf32> to vector<64x32xf32>
    %cst_117 = arith.constant dense<0.000000e+00> : vector<16x32xf32>
    %247 = tpu.matmul %244, %246, %cst_117 {dimension_numbers = #tpu.dot_dimension_numbers<[1], [0], [0], [1], [0, 0, 1, 1], [], []>} : vector<16x64xf32>, vector<64x32xf32>, vector<16x32xf32> -> vector<16x32xf32>
    %c1_118 = arith.constant 1 : index
    %c3_119 = arith.constant 3 : index
    %c0_120 = arith.constant 0 : index
    %c0_121 = arith.constant 0 : index
    %248 = vector.load %arg8[%c1_118, %c3_119, %c0_120, %c0_121] : memref<2x6x1x32xf32, #tpu.memory_space<vmem>>, vector<1x1x1x32xf32>
    %249 = vector.shape_cast %248 : vector<1x1x1x32xf32> to vector<1x32xf32>
    %250 = vector.broadcast %249 : vector<1x32xf32> to vector<16x32xf32>
    %251 = arith.addf %247, %250 : vector<16x32xf32>
    %252 = arith.addf %224, %251 : vector<16x32xf32>
    %c1_122 = arith.constant 1 : index
    %c4_123 = arith.constant 4 : index
    %c0_124 = arith.constant 0 : index
    %c0_125 = arith.constant 0 : index
    %253 = vector.load %arg8[%c1_122, %c4_123, %c0_124, %c0_125] : memref<2x6x1x32xf32, #tpu.memory_space<vmem>>, vector<1x1x1x32xf32>
    %254 = vector.shape_cast %253 : vector<1x1x1x32xf32> to vector<1x32xf32>
    %c1_126 = arith.constant 1 : index
    %c5_127 = arith.constant 5 : index
    %c0_128 = arith.constant 0 : index
    %c0_129 = arith.constant 0 : index
    %255 = vector.load %arg8[%c1_126, %c5_127, %c0_128, %c0_129] : memref<2x6x1x32xf32, #tpu.memory_space<vmem>>, vector<1x1x1x32xf32>
    %256 = vector.shape_cast %255 : vector<1x1x1x32xf32> to vector<1x32xf32>
    %cst_130 = arith.constant dense<0.000000e+00> : vector<16xf32>
    %257 = vector.multi_reduction <add>, %252, %cst_130 [1] : vector<16x32xf32> to vector<16xf32>
    %258 = vector.shape_cast %257 : vector<16xf32> to vector<16x1xf32>
    %cst_131 = arith.constant 3.200000e+01 : f32
    %259 = vector.broadcast %cst_131 : f32 to vector<16x1xf32>
    %260 = arith.divf %258, %259 : vector<16x1xf32>
    %261 = vector.broadcast %260 : vector<16x1xf32> to vector<16x32xf32>
    %262 = arith.subf %252, %261 : vector<16x32xf32>
    %263 = arith.mulf %262, %262 : vector<16x32xf32>
    %cst_132 = arith.constant dense<0.000000e+00> : vector<16xf32>
    %264 = vector.multi_reduction <add>, %263, %cst_132 [1] : vector<16x32xf32> to vector<16xf32>
    %265 = vector.shape_cast %264 : vector<16xf32> to vector<16x1xf32>
    %cst_133 = arith.constant 3.200000e+01 : f32
    %266 = vector.broadcast %cst_133 : f32 to vector<16x1xf32>
    %267 = arith.divf %265, %266 : vector<16x1xf32>
    %268 = vector.broadcast %260 : vector<16x1xf32> to vector<16x32xf32>
    %269 = arith.subf %252, %268 : vector<16x32xf32>
    %cst_134 = arith.constant 9.99999996E-13 : f32
    %270 = vector.broadcast %cst_134 : f32 to vector<16x1xf32>
    %271 = arith.addf %267, %270 : vector<16x1xf32>
    %272 = math.rsqrt %271 : vector<16x1xf32>
    %273 = vector.broadcast %272 : vector<16x1xf32> to vector<16x32xf32>
    %274 = arith.mulf %269, %273 : vector<16x32xf32>
    %275 = vector.broadcast %254 : vector<1x32xf32> to vector<16x32xf32>
    %276 = arith.mulf %274, %275 : vector<16x32xf32>
    %277 = vector.broadcast %256 : vector<1x32xf32> to vector<16x32xf32>
    %278 = arith.addf %276, %277 : vector<16x32xf32>
    %279 = vector.shape_cast %278 : vector<16x32xf32> to vector<2x8x32xf32>
    %cst_135 = arith.constant dense<0.000000e+00> : vector<2x32xf32>
    %280 = vector.multi_reduction <add>, %279, %cst_135 [1] : vector<2x8x32xf32> to vector<2x32xf32>
    %cst_136 = arith.constant 8.000000e+00 : f32
    %281 = vector.broadcast %cst_136 : f32 to vector<2x32xf32>
    %282 = arith.divf %280, %281 : vector<2x32xf32>
    %c0_137 = arith.constant 0 : index
    %c0_138 = arith.constant 0 : index
    %283 = vector.load %arg9[%c0_137, %c0_138] : memref<32x128xf32, #tpu.memory_space<vmem>>, vector<32x128xf32>
    %cst_139 = arith.constant dense<0.000000e+00> : vector<2x128xf32>
    %284 = tpu.matmul %282, %283, %cst_139 {dimension_numbers = #tpu.dot_dimension_numbers<[1], [0], [0], [1], [0, 0, 1, 1], [], []>} : vector<2x32xf32>, vector<32x128xf32>, vector<2x128xf32> -> vector<2x128xf32>
    %c0_140 = arith.constant 0 : index
    %c0_141 = arith.constant 0 : index
    %285 = vector.load %arg10[%c0_140, %c0_141] : memref<1x128xf32, #tpu.memory_space<vmem>>, vector<1x128xf32>
    %286 = vector.broadcast %285 : vector<1x128xf32> to vector<2x128xf32>
    %287 = arith.addf %284, %286 : vector<2x128xf32>
    %c0_142 = arith.constant 0 : index
    %c0_143 = arith.constant 0 : index
    %288 = vector.load %arg11[%c0_142, %c0_143] : memref<2x128xf32, #tpu.memory_space<vmem>>, vector<2x128xf32>
    tpu.vector_store %arg11[%c0_142, %c0_143], %287 {strides = array<i32>} : memref<2x128xf32, #tpu.memory_space<vmem>>, vector<2x128xf32>,
    return
  }
}

</mosaic_0001>

<llo_original>
// kernel: forward.1
$region0: #{forward.1}
  #allocation0 [shape = 'u32[]', space=smem, size = 0x4, offset = 0x4, fixed_abs, tag = 'smem constant byte address 0x4 - core index']
  #allocation1 [shape = 'u32[144,128]{1,0:T(1,128)}', space=vmem, size = 0x12000, scoped, tag = 'internal scratch']
  %s0 = inlined_call_operand.vmem [shape: f32[2,8,32], index: 0, kind: input, shape index: {}]
  %s1 = inlined_call_operand.vmem [shape: f32[2,1,8], index: 1, kind: input, shape index: {}]
  %s2 = inlined_call_operand.vmem [shape: f32[2,32,96], index: 2, kind: input, shape index: {}]
  %s3 = inlined_call_operand.vmem [shape: f32[2,1,96], index: 3, kind: input, shape index: {}]
  %s4 = inlined_call_operand.vmem [shape: f32[2,32,32], index: 4, kind: input, shape index: {}]
  %s5 = inlined_call_operand.vmem [shape: f32[2,32,64], index: 5, kind: input, shape index: {}]
  %s6 = inlined_call_operand.vmem [shape: f32[2,1,64], index: 6, kind: input, shape index: {}]
  %s7 = inlined_call_operand.vmem [shape: f32[2,64,32], index: 7, kind: input, shape index: {}]
  %s8 = inlined_call_operand.vmem [shape: f32[2,6,1,32], index: 8, kind: input, shape index: {}]
  %s9 = inlined_call_operand.vmem [shape: f32[32,128], index: 9, kind: input, shape index: {}]
  %s10 = inlined_call_operand.vmem [shape: f32[1,128], index: 10, kind: input, shape index: {}]
  %s11 = inlined_call_operand.hbm [shape: f32[2,128], index: 11, kind: output, shape index: {}]
  %s12 = sld [smem:[#allocation0]]
  $region54: #{forward.1} parent=0
    _
  %s14 = ssub.s32 1, %s12
  %s15 = scalar_select 0, %s14, %s12
  $region1: #{forward.1} parent=0
    #allocation2 [shape = 'u8[1024]{0}', space=vmem, size = 0x400, scoped, tag = 'output window, operand 0, single buffered']
    #allocation3 [shape = 's32[1]{0}', space=sflag, size = 0x4, scoped, tag = 'scoped memory for forward.1']
    %16 = vsyncpa [#allocation3], 0
    // Predicated region
    $region2: #{forward.1} parent=1 // pred_check
      _
    $region3: #{forward.1} parent=1 // pred_check_branch
      %18 = sbr.rel (0) target = $region5
    $region4: #{forward.1} parent=1 // pred_region
      _
    $region5: #{forward.1} parent=1 // pred_fallthru
      _
    // Predicated region
    $region6: #{forward.1} parent=1 // pred_check
      _
    $region7: #{forward.1} parent=1 // pred_check_branch
      %20 = sbr.rel (0) target = $region9
    $region8: #{forward.1} parent=1 // pred_region
      _
    $region9: #{forward.1} parent=1 // pred_fallthru
      _
    // Predicated region
    $region10: #{forward.1} parent=1 // pred_check
      _
    $region11: #{forward.1} parent=1 // pred_check_branch
      %22 = sbr.rel (0) target = $region13
    $region12: #{forward.1} parent=1 // pred_region
      _
    $region13: #{forward.1} parent=1 // pred_fallthru
      _
    // Predicated region
    $region14: #{forward.1} parent=1 // pred_check
      _
    $region15: #{forward.1} parent=1 // pred_check_branch
      %24 = sbr.rel (0) target = $region17
    $region16: #{forward.1} parent=1 // pred_region
      _
    $region17: #{forward.1} parent=1 // pred_fallthru
      _
    // Predicated region
    $region18: #{forward.1} parent=1 // pred_check
      _
    $region19: #{forward.1} parent=1 // pred_check_branch
      %26 = sbr.rel (0) target = $region21
    $region20: #{forward.1} parent=1 // pred_region
      _
    $region21: #{forward.1} parent=1 // pred_fallthru
      _
    // Predicated region
    $region22: #{forward.1} parent=1 // pred_check
      _
    $region23: #{forward.1} parent=1 // pred_check_branch
      %28 = sbr.rel (0) target = $region25
    $region24: #{forward.1} parent=1 // pred_region
      _
    $region25: #{forward.1} parent=1 // pred_fallthru
      _
    // Predicated region
    $region26: #{forward.1} parent=1 // pred_check
      _
    $region27: #{forward.1} parent=1 // pred_check_branch
      %30 = sbr.rel (0) target = $region29
    $region28: #{forward.1} parent=1 // pred_region
      _
    $region29: #{forward.1} parent=1 // pred_fallthru
      _
    // Predicated region
    $region30: #{forward.1} parent=1 // pred_check
      _
    $region31: #{forward.1} parent=1 // pred_check_branch
      %32 = sbr.rel (0) target = $region33
    $region32: #{forward.1} parent=1 // pred_region
      _
    $region33: #{forward.1} parent=1 // pred_fallthru
      _
    // Predicated region
    $region34: #{forward.1} parent=1 // pred_check
      _
    $region35: #{forward.1} parent=1 // pred_check_branch
      %34 = sbr.rel (0) target = $region37
    $region36: #{forward.1} parent=1 // pred_region
      _
    $region37: #{forward.1} parent=1 // pred_fallthru
      _
    // Predicated region
    $region38: #{forward.1} parent=1 // pred_check
      _
    $region39: #{forward.1} parent=1 // pred_check_branch
      %36 = sbr.rel (0) target = $region41
    $region40: #{forward.1} parent=1 // pred_region
      _
    $region41: #{forward.1} parent=1 // pred_fallthru
      _
    // Predicated region
    $region42: #{forward.1} parent=1 // pred_check
      _
    $region43: #{forward.1} parent=1 // pred_check_branch
      %38 = sbr.rel (0) target = $region45
    $region44: #{forward.1} parent=1 // pred_region
      _
    $region45: #{forward.1} parent=1 // pred_fallthru
      _
    %v39 = vld [vmem:[%s0] sm:$0xff]
    %v40 = vld [vmem:[%s0 + $0x8] sm:$0xff]
    %v41 = vld [vmem:[%s1] sm:$0x1]
    %v42 = vld [vmem:[%s1 + $0x1] sm:$0x1]
    %v43 = vld [vmem:[%s2] sm:$0xff]
    %v44 = vld [vmem:[%s2 + $0x8] sm:$0xff]
    %v45 = vld [vmem:[%s2 + $0x10] sm:$0xff]
    %v46 = vld [vmem:[%s2 + $0x18] sm:$0xff]
    %v47 = vld [vmem:[%s3] sm:$0x1]
    %v49 = vlaneseq
    %v50 = vshrl.u32 %v49, 7
    %v51 = vsub.s32 0, %v50
    %v52 = vrot.slane %v47, %v51
    %vm54 = vcmask 261120
    %v56 = vsel %vm54, %v39, 0
    %v59 = vsel %vm54, %v40, 0
    %61 = vmatprep.subr.mxu0 0.0
    %62 = vmatpush1.msra.mxu0 %v43
    %63 = vmatprep.subr.mxu0 0.0
    %64 = vmatpush1.msra.mxu0 %v44
    %65 = vmatprep.subr.mxu0 0.0
    %66 = vmatpush1.msra.mxu0 %v45
    %67 = vmatprep.subr.mxu0 0.0
    %68 = vmatpush1.msra.mxu0 %v46
    %69 = vmatprep.subr.mxu0 0.0
    %70 = vmatpush1.msra.mxu0 0.0
    %71 = vmatprep.subr.mxu0 0.0
    %72 = vmatpush1.msra.mxu0 0.0
    %73 = vmatprep.subr.mxu0 0.0
    %74 = vmatpush1.msra.mxu0 0.0
    %75 = vmatprep.subr.mxu0 0.0
    %76 = vmatpush1.msra.mxu0 0.0
    %77 = vmatprep.subr.mxu0 0.0
    %78 = vmatpush1.msra.mxu0 0.0
    %79 = vmatprep.subr.mxu0 0.0
    %80 = vmatpush1.msra.mxu0 0.0
    %81 = vmatprep.subr.mxu0 0.0
    %82 = vmatpush1.msra.mxu0 0.0
    %83 = vmatprep.subr.mxu0 0.0
    %84 = vmatpush1.msra.mxu0 0.0
    %85 = vmatprep.subr.mxu0 0.0
    %86 = vmatpush1.msra.mxu0 0.0
    %87 = vmatprep.subr.mxu0 0.0
    %88 = vmatpush1.msra.mxu0 0.0
    %89 = vmatprep.subr.mxu0 0.0
    %90 = vmatpush1.msra.mxu0 0.0
    %91 = vmatprep.subr.mxu0 0.0
    %92 = vmatpush1.msra.mxu0 0.0
    %93 = vmatprep.subr.mxu0 0.0
    %94 = vmatpush1.msra.mxu0 0.0
    %95 = vmatprep.subr.mxu0 0.0
    %96 = vmatpush1.msra.mxu0 0.0
    %97 = vmatprep.subr.mxu0 0.0
    %98 = vmatpush1.msra.mxu0 0.0
    %99 = vmatprep.subr.mxu0 0.0
    %100 = vmatpush1.msra.mxu0 0.0
    %101 = vmatprep.subr.mxu0 0.0
    %102 = vmatpush1.msra.mxu0 0.0
    %103 = vmatprep.subr.mxu0 0.0
    %104 = vmatpush1.msra.mxu0 0.0
    %105 = vmatprep.subr.mxu0 0.0
    %106 = vmatpush1.msra.mxu0 0.0
    %107 = vmatprep.subr.mxu0 0.0
    %108 = vmatpush1.msra.mxu0 0.0
    %109 = vmatprep.subr.mxu0 0.0
    %110 = vmatpush1.msra.mxu0 0.0
    %111 = vmatprep.subr.mxu0 0.0
    %112 = vmatpush1.msra.mxu0 0.0
    %113 = vmatprep.subr.mxu0 0.0
    %114 = vmatpush1.msra.mxu0 0.0
    %115 = vmatprep.subr.mxu0 0.0
    %116 = vmatpush1.msra.mxu0 0.0
    %117 = vmatprep.subr.mxu0 0.0
    %118 = vmatpush1.msra.mxu0 0.0
    %119 = vmatprep.subr.mxu0 0.0
    %120 = vmatpush1.msra.mxu0 0.0
    %121 = vmatprep.subr.mxu0 0.0
    %122 = vmatpush1.msra.mxu0 0.0
    %123 = vmatprep.subr.mxu0 0.0
    %124 = vmatpush1.msra.mxu0 0.0
    %125 = vmatprep.mubr.f32.mxu0 0.0
    %126 = vmatmul.mubr.f32.gmra.mrb[0].mxu0 %v56
    %v127 = vpop.f32.mrb[0].mxu0
    %v128 = vadd.f32 %v52, %v127
    %v129 = vpop.f32.mrb[0].mxu0
    %130 = vmatprep.mubr.f32.mxu0 0.0
    %131 = vmatmul.mubr.f32.gmra.mrb[0].mxu0 %v59
    %v132 = vpop.f32.mrb[0].mxu0
    %v133 = vadd.f32 %v52, %v132
    %v134 = vpop.f32.mrb[0].mxu0
    %135 = vdwg.mxu0
    %v138 = vlaneseq
    %v139 = vshrl.u32 %v138, 7
    %v140 = vsub.s32 0, %v139
    %v141 = vrot.slane %v41, %v140
    %v142 = vlaneseq
    %v143 = vshrl.u32 %v142, 7
    %v144 = vsub.s32 0, %v143
    %v145 = vrot.slane %v42, %v144
    %149 = vrot.lane.b32.xlu0 %v128, 96
    %v150 = vpop.permute.xlu0 %149
    %vm151 = vcmask 130048
    %v152 = vsel %vm151, %v128, 0
    %v154 = vsel %vm151, %v150, 0
    %156 = vmatprep.subr.mxu0 0.0
    %157 = vmatpush1.xpose.msra.mxu0 %v154
    %158 = vmatprep.subr.mxu0 0.0
    %159 = vmatpush1.xpose.msra.mxu0 0.0
    %160 = vmatprep.subr.mxu0 0.0
    %161 = vmatpush1.xpose.msra.mxu0 0.0
    %162 = vmatprep.subr.mxu0 0.0
    %163 = vmatpush1.xpose.msra.mxu0 0.0
    %164 = vmatprep.subr.mxu0 0.0
    %165 = vmatpush1.xpose.msra.mxu0 0.0
    %166 = vmatprep.subr.mxu0 0.0
    %167 = vmatpush1.xpose.msra.mxu0 0.0
    %168 = vmatprep.subr.mxu0 0.0
    %169 = vmatpush1.xpose.msra.mxu0 0.0
    %170 = vmatprep.subr.mxu0 0.0
    %171 = vmatpush1.xpose.msra.mxu0 0.0
    %172 = vmatprep.subr.mxu0 0.0
    %173 = vmatpush1.xpose.msra.mxu0 0.0
    %174 = vmatprep.subr.mxu0 0.0
    %175 = vmatpush1.xpose.msra.mxu0 0.0
    %176 = vmatprep.subr.mxu0 0.0
    %177 = vmatpush1.xpose.msra.mxu0 0.0
    %178 = vmatprep.subr.mxu0 0.0
    %179 = vmatpush1.xpose.msra.mxu0 0.0
    %180 = vmatprep.subr.mxu0 0.0
    %181 = vmatpush1.xpose.msra.mxu0 0.0
    %182 = vmatprep.subr.mxu0 0.0
    %183 = vmatpush1.xpose.msra.mxu0 0.0
    %184 = vmatprep.subr.mxu0 0.0
    %185 = vmatpush1.xpose.msra.mxu0 0.0
    %186 = vmatprep.subr.mxu0 0.0
    %187 = vmatpush1.xpose.msra.mxu0 0.0
    %188 = vmatprep.subr.mxu0 0.0
    %189 = vmatpush1.xpose.msra.mxu0 0.0
    %190 = vmatprep.subr.mxu0 0.0
    %191 = vmatpush1.xpose.msra.mxu0 0.0
    %192 = vmatprep.subr.mxu0 0.0
    %193 = vmatpush1.xpose.msra.mxu0 0.0
    %194 = vmatprep.subr.mxu0 0.0
    %195 = vmatpush1.xpose.msra.mxu0 0.0
    %196 = vmatprep.subr.mxu0 0.0
    %197 = vmatpush1.xpose.msra.mxu0 0.0
    %198 = vmatprep.subr.mxu0 0.0
    %199 = vmatpush1.xpose.msra.mxu0 0.0
    %200 = vmatprep.subr.mxu0 0.0
    %201 = vmatpush1.xpose.msra.mxu0 0.0
    %202 = vmatprep.subr.mxu0 0.0
    %203 = vmatpush1.xpose.msra.mxu0 0.0
    %204 = vmatprep.subr.mxu0 0.0
    %205 = vmatpush1.xpose.msra.mxu0 0.0
    %206 = vmatprep.subr.mxu0 0.0
    %207 = vmatpush1.xpose.msra.mxu0 0.0
    %208 = vmatprep.subr.mxu0 0.0
    %209 = vmatpush1.xpose.msra.mxu0 0.0
    %210 = vmatprep.subr.mxu0 0.0
    %211 = vmatpush1.xpose.msra.mxu0 0.0
    %212 = vmatprep.subr.mxu0 0.0
    %213 = vmatpush1.xpose.msra.mxu0 0.0
    %214 = vmatprep.subr.mxu0 0.0
    %215 = vmatpush1.xpose.msra.mxu0 0.0
    %216 = vmatprep.subr.mxu0 0.0
    %217 = vmatpush1.xpose.msra.mxu0 0.0
    %218 = vmatprep.subr.mxu0 0.0
    %219 = vmatpush1.xpose.msra.mxu0 0.0
    %220 = vmatprep.mubr.f32.mxu0 0.0
    %221 = vmatmul.mubr.f32.gmra.mrb[0].mxu0 %v152
    %v222 = vpop.f32.mrb[0].mxu0
    %v223 = vadd.f32 %v141, %v222
    %v224 = vpop.f32.mrb[0].mxu0
    %225 = vdwg.mxu0
    %227 = vrot.lane.b32.xlu0 %v133, 96
    %v228 = vpop.permute.xlu0 %227
    %v229 = vsel %vm151, %v133, 0
    %v231 = vsel %vm151, %v228, 0
    %233 = vmatprep.subr.mxu0 0.0
    %234 = vmatpush1.xpose.msra.mxu0 %v231
    %235 = vmatprep.subr.mxu0 0.0
    %236 = vmatpush1.xpose.msra.mxu0 0.0
    %237 = vmatprep.subr.mxu0 0.0
    %238 = vmatpush1.xpose.msra.mxu0 0.0
    %239 = vmatprep.subr.mxu0 0.0
    %240 = vmatpush1.xpose.msra.mxu0 0.0
    %241 = vmatprep.subr.mxu0 0.0
    %242 = vmatpush1.xpose.msra.mxu0 0.0
    %243 = vmatprep.subr.mxu0 0.0
    %244 = vmatpush1.xpose.msra.mxu0 0.0
    %245 = vmatprep.subr.mxu0 0.0
    %246 = vmatpush1.xpose.msra.mxu0 0.0
    %247 = vmatprep.subr.mxu0 0.0
    %248 = vmatpush1.xpose.msra.mxu0 0.0
    %249 = vmatprep.subr.mxu0 0.0
    %250 = vmatpush1.xpose.msra.mxu0 0.0
    %251 = vmatprep.subr.mxu0 0.0
    %252 = vmatpush1.xpose.msra.mxu0 0.0
    %253 = vmatprep.subr.mxu0 0.0
    %254 = vmatpush1.xpose.msra.mxu0 0.0
    %255 = vmatprep.subr.mxu0 0.0
    %256 = vmatpush1.xpose.msra.mxu0 0.0
    %257 = vmatprep.subr.mxu0 0.0
    %258 = vmatpush1.xpose.msra.mxu0 0.0
    %259 = vmatprep.subr.mxu0 0.0
    %260 = vmatpush1.xpose.msra.mxu0 0.0
    %261 = vmatprep.subr.mxu0 0.0
    %262 = vmatpush1.xpose.msra.mxu0 0.0
    %263 = vmatprep.subr.mxu0 0.0
    %264 = vmatpush1.xpose.msra.mxu0 0.0
    %265 = vmatprep.subr.mxu0 0.0
    %266 = vmatpush1.xpose.msra.mxu0 0.0
    %267 = vmatprep.subr.mxu0 0.0
    %268 = vmatpush1.xpose.msra.mxu0 0.0
    %269 = vmatprep.subr.mxu0 0.0
    %270 = vmatpush1.xpose.msra.mxu0 0.0
    %271 = vmatprep.subr.mxu0 0.0
    %272 = vmatpush1.xpose.msra.mxu0 0.0
    %273 = vmatprep.subr.mxu0 0.0
    %274 = vmatpush1.xpose.msra.mxu0 0.0
    %275 = vmatprep.subr.mxu0 0.0
    %276 = vmatpush1.xpose.msra.mxu0 0.0
    %277 = vmatprep.subr.mxu0 0.0
    %278 = vmatpush1.xpose.msra.mxu0 0.0
    %279 = vmatprep.subr.mxu0 0.0
    %280 = vmatpush1.xpose.msra.mxu0 0.0
    %281 = vmatprep.subr.mxu0 0.0
    %282 = vmatpush1.xpose.msra.mxu0 0.0
    %283 = vmatprep.subr.mxu0 0.0
    %284 = vmatpush1.xpose.msra.mxu0 0.0
    %285 = vmatprep.subr.mxu0 0.0
    %286 = vmatpush1.xpose.msra.mxu0 0.0
    %287 = vmatprep.subr.mxu0 0.0
    %288 = vmatpush1.xpose.msra.mxu0 0.0
    %289 = vmatprep.subr.mxu0 0.0
    %290 = vmatpush1.xpose.msra.mxu0 0.0
    %291 = vmatprep.subr.mxu0 0.0
    %292 = vmatpush1.xpose.msra.mxu0 0.0
    %293 = vmatprep.subr.mxu0 0.0
    %294 = vmatpush1.xpose.msra.mxu0 0.0
    %295 = vmatprep.subr.mxu0 0.0
    %296 = vmatpush1.xpose.msra.mxu0 0.0
    %297 = vmatprep.mubr.f32.mxu0 0.0
    %298 = vmatmul.mubr.f32.gmra.mrb[0].mxu0 %v229
    %v299 = vpop.f32.mrb[0].mxu0
    %v300 = vadd.f32 %v145, %v299
    %v301 = vpop.f32.mrb[0].mxu0
    %302 = vdwg.mxu0
    %vm303 = vcmask 64512
    %v304 = vsel %vm303, %v223, -inf
    %305 = vmax.xlane.f32.xlu0 %v304
    %v306 = vpop.xlane.xlu0 %305
    %v307 = vsel %vm303, %v300, -inf
    %308 = vmax.xlane.f32.xlu0 %v307
    %v309 = vpop.xlane.xlu0 %308
    %v310 = vsub.f32 %v223, %v306
    %v311 = vsub.f32 %v300, %v309
    %v312 = vmul.f32 %v310, 1.442695
    %v313 = vpow.pop %v312
    %v314 = vmul.f32 %v311, 1.442695
    %v315 = vpow.pop %v314
    %v316 = vsel %vm303, %v313, 0.0
    %317 = vadd.xlane.f32.xlu0 %v316
    %v318 = vpop.xlane.xlu0 %317
    %v319 = vsel %vm303, %v315, 0.0
    %320 = vadd.xlane.f32.xlu0 %v319
    %v321 = vpop.xlane.xlu0 %320
    %v322 = vrcp.pop %v318
    %v323 = vrcp.pop %v321
    %v324 = vmul.f32 %v313, %v322
    %v325 = vmul.f32 %v315, %v323
    %326 = vrot.lane.b32.xlu0 %v128, 64
    %v327 = vpop.permute.xlu0 %326
    %v330 = vsel %vm303, %v324, 0
    %332 = vmatprep.subr.mxu0 0.0
    %333 = vmatpush1.msra.mxu0 %v327
    %334 = vmatprep.subr.mxu0 0.0
    %335 = vmatpush1.msra.mxu0 0.0
    %336 = vmatprep.subr.mxu0 0.0
    %337 = vmatpush1.msra.mxu0 0.0
    %338 = vmatprep.subr.mxu0 0.0
    %339 = vmatpush1.msra.mxu0 0.0
    %340 = vmatprep.subr.mxu0 0.0
    %341 = vmatpush1.msra.mxu0 0.0
    %342 = vmatprep.subr.mxu0 0.0
    %343 = vmatpush1.msra.mxu0 0.0
    %344 = vmatprep.subr.mxu0 0.0
    %345 = vmatpush1.msra.mxu0 0.0
    %346 = vmatprep.subr.mxu0 0.0
    %347 = vmatpush1.msra.mxu0 0.0
    %348 = vmatprep.subr.mxu0 0.0
    %349 = vmatpush1.msra.mxu0 0.0
    %350 = vmatprep.subr.mxu0 0.0
    %351 = vmatpush1.msra.mxu0 0.0
    %352 = vmatprep.subr.mxu0 0.0
    %353 = vmatpush1.msra.mxu0 0.0
    %354 = vmatprep.subr.mxu0 0.0
    %355 = vmatpush1.msra.mxu0 0.0
    %356 = vmatprep.subr.mxu0 0.0
    %357 = vmatpush1.msra.mxu0 0.0
    %358 = vmatprep.subr.mxu0 0.0
    %359 = vmatpush1.msra.mxu0 0.0
    %360 = vmatprep.subr.mxu0 0.0
    %361 = vmatpush1.msra.mxu0 0.0
    %362 = vmatprep.subr.mxu0 0.0
    %363 = vmatpush1.msra.mxu0 0.0
    %364 = vmatprep.subr.mxu0 0.0
    %365 = vmatpush1.msra.mxu0 0.0
    %366 = vmatprep.subr.mxu0 0.0
    %367 = vmatpush1.msra.mxu0 0.0
    %368 = vmatprep.subr.mxu0 0.0
    %369 = vmatpush1.msra.mxu0 0.0
    %370 = vmatprep.subr.mxu0 0.0
    %371 = vmatpush1.msra.mxu0 0.0
    %372 = vmatprep.subr.mxu0 0.0
    %373 = vmatpush1.msra.mxu0 0.0
    %374 = vmatprep.subr.mxu0 0.0
    %375 = vmatpush1.msra.mxu0 0.0
    %376 = vmatprep.subr.mxu0 0.0
    %377 = vmatpush1.msra.mxu0 0.0
    %378 = vmatprep.subr.mxu0 0.0
    %379 = vmatpush1.msra.mxu0 0.0
    %380 = vmatprep.subr.mxu0 0.0
    %381 = vmatpush1.msra.mxu0 0.0
    %382 = vmatprep.subr.mxu0 0.0
    %383 = vmatpush1.msra.mxu0 0.0
    %384 = vmatprep.subr.mxu0 0.0
    %385 = vmatpush1.msra.mxu0 0.0
    %386 = vmatprep.subr.mxu0 0.0
    %387 = vmatpush1.msra.mxu0 0.0
    %388 = vmatprep.subr.mxu0 0.0
    %389 = vmatpush1.msra.mxu0 0.0
    %390 = vmatprep.subr.mxu0 0.0
    %391 = vmatpush1.msra.mxu0 0.0
    %392 = vmatprep.subr.mxu0 0.0
    %393 = vmatpush1.msra.mxu0 0.0
    %394 = vmatprep.subr.mxu0 0.0
    %395 = vmatpush1.msra.mxu0 0.0
    %396 = vmatprep.mubr.f32.mxu0 0.0
    %397 = vmatmul.mubr.f32.gmra.mrb[0].mxu0 %v330
    %v398 = vpop.f32.mrb[0].mxu0
    %v399 = vadd.f32 0.0, %v398
    %v400 = vpop.f32.mrb[0].mxu0
    %401 = vdwg.mxu0
    %402 = vrot.lane.b32.xlu0 %v133, 64
    %v403 = vpop.permute.xlu0 %402
    %v406 = vsel %vm303, %v325, 0
    %408 = vmatprep.subr.mxu0 0.0
    %409 = vmatpush1.msra.mxu0 %v403
    %410 = vmatprep.subr.mxu0 0.0
    %411 = vmatpush1.msra.mxu0 0.0
    %412 = vmatprep.subr.mxu0 0.0
    %413 = vmatpush1.msra.mxu0 0.0
    %414 = vmatprep.subr.mxu0 0.0
    %415 = vmatpush1.msra.mxu0 0.0
    %416 = vmatprep.subr.mxu0 0.0
    %417 = vmatpush1.msra.mxu0 0.0
    %418 = vmatprep.subr.mxu0 0.0
    %419 = vmatpush1.msra.mxu0 0.0
    %420 = vmatprep.subr.mxu0 0.0
    %421 = vmatpush1.msra.mxu0 0.0
    %422 = vmatprep.subr.mxu0 0.0
    %423 = vmatpush1.msra.mxu0 0.0
    %424 = vmatprep.subr.mxu0 0.0
    %425 = vmatpush1.msra.mxu0 0.0
    %426 = vmatprep.subr.mxu0 0.0
    %427 = vmatpush1.msra.mxu0 0.0
    %428 = vmatprep.subr.mxu0 0.0
    %429 = vmatpush1.msra.mxu0 0.0
    %430 = vmatprep.subr.mxu0 0.0
    %431 = vmatpush1.msra.mxu0 0.0
    %432 = vmatprep.subr.mxu0 0.0
    %433 = vmatpush1.msra.mxu0 0.0
    %434 = vmatprep.subr.mxu0 0.0
    %435 = vmatpush1.msra.mxu0 0.0
    %436 = vmatprep.subr.mxu0 0.0
    %437 = vmatpush1.msra.mxu0 0.0
    %438 = vmatprep.subr.mxu0 0.0
    %439 = vmatpush1.msra.mxu0 0.0
    %440 = vmatprep.subr.mxu0 0.0
    %441 = vmatpush1.msra.mxu0 0.0
    %442 = vmatprep.subr.mxu0 0.0
    %443 = vmatpush1.msra.mxu0 0.0
    %444 = vmatprep.subr.mxu0 0.0
    %445 = vmatpush1.msra.mxu0 0.0
    %446 = vmatprep.subr.mxu0 0.0
    %447 = vmatpush1.msra.mxu0 0.0
    %448 = vmatprep.subr.mxu0 0.0
    %449 = vmatpush1.msra.mxu0 0.0
    %450 = vmatprep.subr.mxu0 0.0
    %451 = vmatpush1.msra.mxu0 0.0
    %452 = vmatprep.subr.mxu0 0.0
    %453 = vmatpush1.msra.mxu0 0.0
    %454 = vmatprep.subr.mxu0 0.0
    %455 = vmatpush1.msra.mxu0 0.0
    %456 = vmatprep.subr.mxu0 0.0
    %457 = vmatpush1.msra.mxu0 0.0
    %458 = vmatprep.subr.mxu0 0.0
    %459 = vmatpush1.msra.mxu0 0.0
    %460 = vmatprep.subr.mxu0 0.0
    %461 = vmatpush1.msra.mxu0 0.0
    %462 = vmatprep.subr.mxu0 0.0
    %463 = vmatpush1.msra.mxu0 0.0
    %464 = vmatprep.subr.mxu0 0.0
    %465 = vmatpush1.msra.mxu0 0.0
    %466 = vmatprep.subr.mxu0 0.0
    %467 = vmatpush1.msra.mxu0 0.0
    %468 = vmatprep.subr.mxu0 0.0
    %469 = vmatpush1.msra.mxu0 0.0
    %470 = vmatprep.subr.mxu0 0.0
    %471 = vmatpush1.msra.mxu0 0.0
    %472 = vmatprep.mubr.f32.mxu0 0.0
    %473 = vmatmul.mubr.f32.gmra.mrb[0].mxu0 %v406
    %v474 = vpop.f32.mrb[0].mxu0
    %v475 = vadd.f32 0.0, %v474
    %v476 = vpop.f32.mrb[0].mxu0
    %477 = vdwg.mxu0
    %478 = vrot.lane.b32.xlu0 %v128, 112
    %v479 = vpop.permute.xlu0 %478
    %480 = vrot.lane.b32.xlu0 %v128, 80
    %v481 = vpop.permute.xlu0 %480
    %v482 = vsel %vm151, %v479, 0
    %v484 = vsel %vm151, %v481, 0
    %486 = vmatprep.subr.mxu0 0.0
    %487 = vmatpush1.xpose.msra.mxu0 %v484
    %488 = vmatprep.subr.mxu0 0.0
    %489 = vmatpush1.xpose.msra.mxu0 0.0
    %490 = vmatprep.subr.mxu0 0.0
    %491 = vmatpush1.xpose.msra.mxu0 0.0
    %492 = vmatprep.subr.mxu0 0.0
    %493 = vmatpush1.xpose.msra.mxu0 0.0
    %494 = vmatprep.subr.mxu0 0.0
    %495 = vmatpush1.xpose.msra.mxu0 0.0
    %496 = vmatprep.subr.mxu0 0.0
    %497 = vmatpush1.xpose.msra.mxu0 0.0
    %498 = vmatprep.subr.mxu0 0.0
    %499 = vmatpush1.xpose.msra.mxu0 0.0
    %500 = vmatprep.subr.mxu0 0.0
    %501 = vmatpush1.xpose.msra.mxu0 0.0
    %502 = vmatprep.subr.mxu0 0.0
    %503 = vmatpush1.xpose.msra.mxu0 0.0
    %504 = vmatprep.subr.mxu0 0.0
    %505 = vmatpush1.xpose.msra.mxu0 0.0
    %506 = vmatprep.subr.mxu0 0.0
    %507 = vmatpush1.xpose.msra.mxu0 0.0
    %508 = vmatprep.subr.mxu0 0.0
    %509 = vmatpush1.xpose.msra.mxu0 0.0
    %510 = vmatprep.subr.mxu0 0.0
    %511 = vmatpush1.xpose.msra.mxu0 0.0
    %512 = vmatprep.subr.mxu0 0.0
    %513 = vmatpush1.xpose.msra.mxu0 0.0
    %514 = vmatprep.subr.mxu0 0.0
    %515 = vmatpush1.xpose.msra.mxu0 0.0
    %516 = vmatprep.subr.mxu0 0.0
    %517 = vmatpush1.xpose.msra.mxu0 0.0
    %518 = vmatprep.subr.mxu0 0.0
    %519 = vmatpush1.xpose.msra.mxu0 0.0
    %520 = vmatprep.subr.mxu0 0.0
    %521 = vmatpush1.xpose.msra.mxu0 0.0
    %522 = vmatprep.subr.mxu0 0.0
    %523 = vmatpush1.xpose.msra.mxu0 0.0
    %524 = vmatprep.subr.mxu0 0.0
    %525 = vmatpush1.xpose.msra.mxu0 0.0
    %526 = vmatprep.subr.mxu0 0.0
    %527 = vmatpush1.xpose.msra.mxu0 0.0
    %528 = vmatprep.subr.mxu0 0.0
    %529 = vmatpush1.xpose.msra.mxu0 0.0
    %530 = vmatprep.subr.mxu0 0.0
    %531 = vmatpush1.xpose.msra.mxu0 0.0
    %532 = vmatprep.subr.mxu0 0.0
    %533 = vmatpush1.xpose.msra.mxu0 0.0
    %534 = vmatprep.subr.mxu0 0.0
    %535 = vmatpush1.xpose.msra.mxu0 0.0
    %536 = vmatprep.subr.mxu0 0.0
    %537 = vmatpush1.xpose.msra.mxu0 0.0
    %538 = vmatprep.subr.mxu0 0.0
    %539 = vmatpush1.xpose.msra.mxu0 0.0
    %540 = vmatprep.subr.mxu0 0.0
    %541 = vmatpush1.xpose.msra.mxu0 0.0
    %542 = vmatprep.subr.mxu0 0.0
    %543 = vmatpush1.xpose.msra.mxu0 0.0
    %544 = vmatprep.subr.mxu0 0.0
    %545 = vmatpush1.xpose.msra.mxu0 0.0
    %546 = vmatprep.subr.mxu0 0.0
    %547 = vmatpush1.xpose.msra.mxu0 0.0
    %548 = vmatprep.subr.mxu0 0.0
    %549 = vmatpush1.xpose.msra.mxu0 0.0
    %550 = vmatprep.mubr.f32.mxu0 0.0
    %551 = vmatmul.mubr.f32.gmra.mrb[0].mxu0 %v482
    %v552 = vpop.f32.mrb[0].mxu0
    %v553 = vadd.f32 %v141, %v552
    %v554 = vpop.f32.mrb[0].mxu0
    %555 = vdwg.mxu0
    %556 = vrot.lane.b32.xlu0 %v133, 112
    %v557 = vpop.permute.xlu0 %556
    %558 = vrot.lane.b32.xlu0 %v133, 80
    %v559 = vpop.permute.xlu0 %558
    %v560 = vsel %vm151, %v557, 0
    %v562 = vsel %vm151, %v559, 0
    %564 = vmatprep.subr.mxu0 0.0
    %565 = vmatpush1.xpose.msra.mxu0 %v562
    %566 = vmatprep.subr.mxu0 0.0
    %567 = vmatpush1.xpose.msra.mxu0 0.0
    %568 = vmatprep.subr.mxu0 0.0
    %569 = vmatpush1.xpose.msra.mxu0 0.0
    %570 = vmatprep.subr.mxu0 0.0
    %571 = vmatpush1.xpose.msra.mxu0 0.0
    %572 = vmatprep.subr.mxu0 0.0
    %573 = vmatpush1.xpose.msra.mxu0 0.0
    %574 = vmatprep.subr.mxu0 0.0
    %575 = vmatpush1.xpose.msra.mxu0 0.0
    %576 = vmatprep.subr.mxu0 0.0
    %577 = vmatpush1.xpose.msra.mxu0 0.0
    %578 = vmatprep.subr.mxu0 0.0
    %579 = vmatpush1.xpose.msra.mxu0 0.0
    %580 = vmatprep.subr.mxu0 0.0
    %581 = vmatpush1.xpose.msra.mxu0 0.0
    %582 = vmatprep.subr.mxu0 0.0
    %583 = vmatpush1.xpose.msra.mxu0 0.0
    %584 = vmatprep.subr.mxu0 0.0
    %585 = vmatpush1.xpose.msra.mxu0 0.0
    %586 = vmatprep.subr.mxu0 0.0
    %587 = vmatpush1.xpose.msra.mxu0 0.0
    %588 = vmatprep.subr.mxu0 0.0
    %589 = vmatpush1.xpose.msra.mxu0 0.0
    %590 = vmatprep.subr.mxu0 0.0
    %591 = vmatpush1.xpose.msra.mxu0 0.0
    %592 = vmatprep.subr.mxu0 0.0
    %593 = vmatpush1.xpose.msra.mxu0 0.0
    %594 = vmatprep.subr.mxu0 0.0
    %595 = vmatpush1.xpose.msra.mxu0 0.0
    %596 = vmatprep.subr.mxu0 0.0
    %597 = vmatpush1.xpose.msra.mxu0 0.0
    %598 = vmatprep.subr.mxu0 0.0
    %599 = vmatpush1.xpose.msra.mxu0 0.0
    %600 = vmatprep.subr.mxu0 0.0
    %601 = vmatpush1.xpose.msra.mxu0 0.0
    %602 = vmatprep.subr.mxu0 0.0
    %603 = vmatpush1.xpose.msra.mxu0 0.0
    %604 = vmatprep.subr.mxu0 0.0
    %605 = vmatpush1.xpose.msra.mxu0 0.0
    %606 = vmatprep.subr.mxu0 0.0
    %607 = vmatpush1.xpose.msra.mxu0 0.0
    %608 = vmatprep.subr.mxu0 0.0
    %609 = vmatpush1.xpose.msra.mxu0 0.0
    %610 = vmatprep.subr.mxu0 0.0
    %611 = vmatpush1.xpose.msra.mxu0 0.0
    %612 = vmatprep.subr.mxu0 0.0
    %613 = vmatpush1.xpose.msra.mxu0 0.0
    %614 = vmatprep.subr.mxu0 0.0
    %615 = vmatpush1.xpose.msra.mxu0 0.0
    %616 = vmatprep.subr.mxu0 0.0
    %617 = vmatpush1.xpose.msra.mxu0 0.0
    %618 = vmatprep.subr.mxu0 0.0
    %619 = vmatpush1.xpose.msra.mxu0 0.0
    %620 = vmatprep.subr.mxu0 0.0
    %621 = vmatpush1.xpose.msra.mxu0 0.0
    %622 = vmatprep.subr.mxu0 0.0
    %623 = vmatpush1.xpose.msra.mxu0 0.0
    %624 = vmatprep.subr.mxu0 0.0
    %625 = vmatpush1.xpose.msra.mxu0 0.0
    %626 = vmatprep.subr.mxu0 0.0
    %627 = vmatpush1.xpose.msra.mxu0 0.0
    %628 = vmatprep.mubr.f32.mxu0 0.0
    %629 = vmatmul.mubr.f32.gmra.mrb[0].mxu0 %v560
    %v630 = vpop.f32.mrb[0].mxu0
    %v631 = vadd.f32 %v145, %v630
    %v632 = vpop.f32.mrb[0].mxu0
    %633 = vdwg.mxu0
    %v634 = vsel %vm303, %v553, -inf
    %635 = vmax.xlane.f32.xlu0 %v634
    %v636 = vpop.xlane.xlu0 %635
    %v637 = vsel %vm303, %v631, -inf
    %638 = vmax.xlane.f32.xlu0 %v637
    %v639 = vpop.xlane.xlu0 %638
    %v640 = vsub.f32 %v553, %v636
    %v641 = vsub.f32 %v631, %v639
    %v642 = vmul.f32 %v640, 1.442695
    %v643 = vpow.pop %v642
    %v644 = vmul.f32 %v641, 1.442695
    %v645 = vpow.pop %v644
    %v646 = vsel %vm303, %v643, 0.0
    %647 = vadd.xlane.f32.xlu0 %v646
    %v648 = vpop.xlane.xlu0 %647
    %v649 = vsel %vm303, %v645, 0.0
    %650 = vadd.xlane.f32.xlu0 %v649
    %v651 = vpop.xlane.xlu0 %650
    %v652 = vrcp.pop %v648
    %v653 = vrcp.pop %v651
    %v654 = vmul.f32 %v643, %v652
    %v655 = vmul.f32 %v645, %v653
    %656 = vrot.lane.b32.xlu0 %v128, 48
    %v657 = vpop.permute.xlu0 %656
    %v660 = vsel %vm303, %v654, 0
    %662 = vmatprep.subr.mxu0 0.0
    %663 = vmatpush1.msra.mxu0 %v657
    %664 = vmatprep.subr.mxu0 0.0
    %665 = vmatpush1.msra.mxu0 0.0
    %666 = vmatprep.subr.mxu0 0.0
    %667 = vmatpush1.msra.mxu0 0.0
    %668 = vmatprep.subr.mxu0 0.0
    %669 = vmatpush1.msra.mxu0 0.0
    %670 = vmatprep.subr.mxu0 0.0
    %671 = vmatpush1.msra.mxu0 0.0
    %672 = vmatprep.subr.mxu0 0.0
    %673 = vmatpush1.msra.mxu0 0.0
    %674 = vmatprep.subr.mxu0 0.0
    %675 = vmatpush1.msra.mxu0 0.0
    %676 = vmatprep.subr.mxu0 0.0
    %677 = vmatpush1.msra.mxu0 0.0
    %678 = vmatprep.subr.mxu0 0.0
    %679 = vmatpush1.msra.mxu0 0.0
    %680 = vmatprep.subr.mxu0 0.0
    %681 = vmatpush1.msra.mxu0 0.0
    %682 = vmatprep.subr.mxu0 0.0
    %683 = vmatpush1.msra.mxu0 0.0
    %684 = vmatprep.subr.mxu0 0.0
    %685 = vmatpush1.msra.mxu0 0.0
    %686 = vmatprep.subr.mxu0 0.0
    %687 = vmatpush1.msra.mxu0 0.0
    %688 = vmatprep.subr.mxu0 0.0
    %689 = vmatpush1.msra.mxu0 0.0
    %690 = vmatprep.subr.mxu0 0.0
    %691 = vmatpush1.msra.mxu0 0.0
    %692 = vmatprep.subr.mxu0 0.0
    %693 = vmatpush1.msra.mxu0 0.0
    %694 = vmatprep.subr.mxu0 0.0
    %695 = vmatpush1.msra.mxu0 0.0
    %696 = vmatprep.subr.mxu0 0.0
    %697 = vmatpush1.msra.mxu0 0.0
    %698 = vmatprep.subr.mxu0 0.0
    %699 = vmatpush1.msra.mxu0 0.0
    %700 = vmatprep.subr.mxu0 0.0
    %701 = vmatpush1.msra.mxu0 0.0
    %702 = vmatprep.subr.mxu0 0.0
    %703 = vmatpush1.msra.mxu0 0.0
    %704 = vmatprep.subr.mxu0 0.0
    %705 = vmatpush1.msra.mxu0 0.0
    %706 = vmatprep.subr.mxu0 0.0
    %707 = vmatpush1.msra.mxu0 0.0
    %708 = vmatprep.subr.mxu0 0.0
    %709 = vmatpush1.msra.mxu0 0.0
    %710 = vmatprep.subr.mxu0 0.0
    %711 = vmatpush1.msra.mxu0 0.0
    %712 = vmatprep.subr.mxu0 0.0
    %713 = vmatpush1.msra.mxu0 0.0
    %714 = vmatprep.subr.mxu0 0.0
    %715 = vmatpush1.msra.mxu0 0.0
    %716 = vmatprep.subr.mxu0 0.0
    %717 = vmatpush1.msra.mxu0 0.0
    %718 = vmatprep.subr.mxu0 0.0
    %719 = vmatpush1.msra.mxu0 0.0
    %720 = vmatprep.subr.mxu0 0.0
    %721 = vmatpush1.msra.mxu0 0.0
    %722 = vmatprep.subr.mxu0 0.0
    %723 = vmatpush1.msra.mxu0 0.0
    %724 = vmatprep.subr.mxu0 0.0
    %725 = vmatpush1.msra.mxu0 0.0
    %726 = vmatprep.mubr.f32.mxu0 0.0
    %727 = vmatmul.mubr.f32.gmra.mrb[0].mxu0 %v660
    %v728 = vpop.f32.mrb[0].mxu0
    %v729 = vadd.f32 0.0, %v728
    %v730 = vpop.f32.mrb[0].mxu0
    %731 = vdwg.mxu0
    %732 = vrot.lane.b32.xlu0 %v133, 48
    %v733 = vpop.permute.xlu0 %732
    %v736 = vsel %vm303, %v655, 0
    %738 = vmatprep.subr.mxu0 0.0
    %739 = vmatpush1.msra.mxu0 %v733
    %740 = vmatprep.subr.mxu0 0.0
    %741 = vmatpush1.msra.mxu0 0.0
    %742 = vmatprep.subr.mxu0 0.0
    %743 = vmatpush1.msra.mxu0 0.0
    %744 = vmatprep.subr.mxu0 0.0
    %745 = vmatpush1.msra.mxu0 0.0
    %746 = vmatprep.subr.mxu0 0.0
    %747 = vmatpush1.msra.mxu0 0.0
    %748 = vmatprep.subr.mxu0 0.0
    %749 = vmatpush1.msra.mxu0 0.0
    %750 = vmatprep.subr.mxu0 0.0
    %751 = vmatpush1.msra.mxu0 0.0
    %752 = vmatprep.subr.mxu0 0.0
    %753 = vmatpush1.msra.mxu0 0.0
    %754 = vmatprep.subr.mxu0 0.0
    %755 = vmatpush1.msra.mxu0 0.0
    %756 = vmatprep.subr.mxu0 0.0
    %757 = vmatpush1.msra.mxu0 0.0
    %758 = vmatprep.subr.mxu0 0.0
    %759 = vmatpush1.msra.mxu0 0.0
    %760 = vmatprep.subr.mxu0 0.0
    %761 = vmatpush1.msra.mxu0 0.0
    %762 = vmatprep.subr.mxu0 0.0
    %763 = vmatpush1.msra.mxu0 0.0
    %764 = vmatprep.subr.mxu0 0.0
    %765 = vmatpush1.msra.mxu0 0.0
    %766 = vmatprep.subr.mxu0 0.0
    %767 = vmatpush1.msra.mxu0 0.0
    %768 = vmatprep.subr.mxu0 0.0
    %769 = vmatpush1.msra.mxu0 0.0
    %770 = vmatprep.subr.mxu0 0.0
    %771 = vmatpush1.msra.mxu0 0.0
    %772 = vmatprep.subr.mxu0 0.0
    %773 = vmatpush1.msra.mxu0 0.0
    %774 = vmatprep.subr.mxu0 0.0
    %775 = vmatpush1.msra.mxu0 0.0
    %776 = vmatprep.subr.mxu0 0.0
    %777 = vmatpush1.msra.mxu0 0.0
    %778 = vmatprep.subr.mxu0 0.0
    %779 = vmatpush1.msra.mxu0 0.0
    %780 = vmatprep.subr.mxu0 0.0
    %781 = vmatpush1.msra.mxu0 0.0
    %782 = vmatprep.subr.mxu0 0.0
    %783 = vmatpush1.msra.mxu0 0.0
    %784 = vmatprep.subr.mxu0 0.0
    %785 = vmatpush1.msra.mxu0 0.0
    %786 = vmatprep.subr.mxu0 0.0
    %787 = vmatpush1.msra.mxu0 0.0
    %788 = vmatprep.subr.mxu0 0.0
    %789 = vmatpush1.msra.mxu0 0.0
    %790 = vmatprep.subr.mxu0 0.0
    %791 = vmatpush1.msra.mxu0 0.0
    %792 = vmatprep.subr.mxu0 0.0
    %793 = vmatpush1.msra.mxu0 0.0
    %794 = vmatprep.subr.mxu0 0.0
    %795 = vmatpush1.msra.mxu0 0.0
    %796 = vmatprep.subr.mxu0 0.0
    %797 = vmatpush1.msra.mxu0 0.0
    %798 = vmatprep.subr.mxu0 0.0
    %799 = vmatpush1.msra.mxu0 0.0
    %800 = vmatprep.subr.mxu0 0.0
    %801 = vmatpush1.msra.mxu0 0.0
    %802 = vmatprep.mubr.f32.mxu0 0.0
    %803 = vmatmul.mubr.f32.gmra.mrb[0].mxu0 %v736
    %v804 = vpop.f32.mrb[0].mxu0
    %v805 = vadd.f32 0.0, %v804
    %v806 = vpop.f32.mrb[0].mxu0
    %807 = vdwg.mxu0
    %810 = vrot.lane.b32.xlu0 %v729, 16
    %v811 = vpop.permute.xlu0 %810
    %812 = vrot.lane.b32.xlu0 %v805, 16
    %v813 = vpop.permute.xlu0 %812
    %v816 = vsel %vm151, %v399, %v811
    %v817 = vsel %vm151, %v475, %v813
    %v818 = vld [vmem:[%s4] sm:$0xff]
    %v819 = vld [vmem:[%s4 + $0x8] sm:$0xff]
    %v820 = vld [vmem:[%s4 + $0x10] sm:$0xff]
    %v821 = vld [vmem:[%s4 + $0x18] sm:$0xff]
    %v822 = vld [vmem:[%s8] sm:$0x1]
    %v824 = vlaneseq
    %v825 = vshrl.u32 %v824, 7
    %v826 = vsub.s32 0, %v825
    %v827 = vrot.slane %v822, %v826
    %v830 = vsel %vm54, %v816, 0
    %v833 = vsel %vm54, %v817, 0
    %835 = vmatprep.subr.mxu0 0.0
    %836 = vmatpush1.msra.mxu0 %v818
    %837 = vmatprep.subr.mxu0 0.0
    %838 = vmatpush1.msra.mxu0 %v819
    %839 = vmatprep.subr.mxu0 0.0
    %840 = vmatpush1.msra.mxu0 %v820
    %841 = vmatprep.subr.mxu0 0.0
    %842 = vmatpush1.msra.mxu0 %v821
    %843 = vmatprep.subr.mxu0 0.0
    %844 = vmatpush1.msra.mxu0 0.0
    %845 = vmatprep.subr.mxu0 0.0
    %846 = vmatpush1.msra.mxu0 0.0
    %847 = vmatprep.subr.mxu0 0.0
    %848 = vmatpush1.msra.mxu0 0.0
    %849 = vmatprep.subr.mxu0 0.0
    %850 = vmatpush1.msra.mxu0 0.0
    %851 = vmatprep.subr.mxu0 0.0
    %852 = vmatpush1.msra.mxu0 0.0
    %853 = vmatprep.subr.mxu0 0.0
    %854 = vmatpush1.msra.mxu0 0.0
    %855 = vmatprep.subr.mxu0 0.0
    %856 = vmatpush1.msra.mxu0 0.0
    %857 = vmatprep.subr.mxu0 0.0
    %858 = vmatpush1.msra.mxu0 0.0
    %859 = vmatprep.subr.mxu0 0.0
    %860 = vmatpush1.msra.mxu0 0.0
    %861 = vmatprep.subr.mxu0 0.0
    %862 = vmatpush1.msra.mxu0 0.0
    %863 = vmatprep.subr.mxu0 0.0
    %864 = vmatpush1.msra.mxu0 0.0
    %865 = vmatprep.subr.mxu0 0.0
    %866 = vmatpush1.msra.mxu0 0.0
    %867 = vmatprep.subr.mxu0 0.0
    %868 = vmatpush1.msra.mxu0 0.0
    %869 = vmatprep.subr.mxu0 0.0
    %870 = vmatpush1.msra.mxu0 0.0
    %871 = vmatprep.subr.mxu0 0.0
    %872 = vmatpush1.msra.mxu0 0.0
    %873 = vmatprep.subr.mxu0 0.0
    %874 = vmatpush1.msra.mxu0 0.0
    %875 = vmatprep.subr.mxu0 0.0
    %876 = vmatpush1.msra.mxu0 0.0
    %877 = vmatprep.subr.mxu0 0.0
    %878 = vmatpush1.msra.mxu0 0.0
    %879 = vmatprep.subr.mxu0 0.0
    %880 = vmatpush1.msra.mxu0 0.0
    %881 = vmatprep.subr.mxu0 0.0
    %882 = vmatpush1.msra.mxu0 0.0
    %883 = vmatprep.subr.mxu0 0.0
    %884 = vmatpush1.msra.mxu0 0.0
    %885 = vmatprep.subr.mxu0 0.0
    %886 = vmatpush1.msra.mxu0 0.0
    %887 = vmatprep.subr.mxu0 0.0
    %888 = vmatpush1.msra.mxu0 0.0
    %889 = vmatprep.subr.mxu0 0.0
    %890 = vmatpush1.msra.mxu0 0.0
    %891 = vmatprep.subr.mxu0 0.0
    %892 = vmatpush1.msra.mxu0 0.0
    %893 = vmatprep.subr.mxu0 0.0
    %894 = vmatpush1.msra.mxu0 0.0
    %895 = vmatprep.subr.mxu0 0.0
    %896 = vmatpush1.msra.mxu0 0.0
    %897 = vmatprep.subr.mxu0 0.0
    %898 = vmatpush1.msra.mxu0 0.0
    %899 = vmatprep.mubr.f32.mxu0 0.0
    %900 = vmatmul.mubr.f32.gmra.mrb[0].mxu0 %v830
    %v901 = vpop.f32.mrb[0].mxu0
    %v902 = vadd.f32 %v827, %v901
    %v903 = vpop.f32.mrb[0].mxu0
    %904 = vmatprep.mubr.f32.mxu0 0.0
    %905 = vmatmul.mubr.f32.gmra.mrb[0].mxu0 %v833
    %v906 = vpop.f32.mrb[0].mxu0
    %v907 = vadd.f32 %v827, %v906
    %v908 = vpop.f32.mrb[0].mxu0
    %909 = vdwg.mxu0
    %v910 = vadd.f32 %v39, %v902
    %v911 = vadd.f32 %v40, %v907
    %s912 = scalar_lea.vmem %s8, 1
    %v913 = vld [vmem:[%s912] sm:$0x1]
    %s914 = scalar_lea.vmem %s8, 2
    %v915 = vld [vmem:[%s914] sm:$0x1]
    %v916 = vsel %vm54, %v910, 0.0
    %917 = vadd.xlane.f32.xlu0 %v916
    %v918 = vpop.xlane.xlu0 %917
    %v919 = vsel %vm54, %v911, 0.0
    %920 = vadd.xlane.f32.xlu0 %v919
    %v921 = vpop.xlane.xlu0 %920
    %v922 = vrcp.pop 32.0
    %v923 = vmul.f32 %v918, %v922
    %v924 = vmul.f32 %v921, %v922
    %v925 = vsub.f32 %v910, %v923
    %v926 = vsub.f32 %v911, %v924
    %v927 = vmul.f32 %v925, %v925
    %v928 = vmul.f32 %v926, %v926
    %v929 = vsel %vm54, %v927, 0.0
    %930 = vadd.xlane.f32.xlu0 %v929
    %v931 = vpop.xlane.xlu0 %930
    %v932 = vsel %vm54, %v928, 0.0
    %933 = vadd.xlane.f32.xlu0 %v932
    %v934 = vpop.xlane.xlu0 %933
    %v935 = vmul.f32 %v931, %v922
    %v936 = vmul.f32 %v934, %v922
    %v937 = vadd.f32 %v935, 1e-12
    %v938 = vadd.f32 %v936, 1e-12
    %v939 = vrsqrt.pop %v937
    %v940 = vrsqrt.pop %v938
    %v941 = vmul.f32 %v925, %v939
    %v942 = vmul.f32 %v926, %v940
    %v944 = vlaneseq
    %v945 = vshrl.u32 %v944, 7
    %v946 = vsub.s32 0, %v945
    %v947 = vrot.slane %v913, %v946
    %v949 = vmul.f32 %v941, %v947
    %v950 = vmul.f32 %v942, %v947
    %v952 = vlaneseq
    %v953 = vshrl.u32 %v952, 7
    %v954 = vsub.s32 0, %v953
    %v955 = vrot.slane %v915, %v954
    %v957 = vadd.f32 %v949, %v955
    %v958 = vadd.f32 %v950, %v955
    %v959 = vld [vmem:[%s5] sm:$0xff]
    %v960 = vld [vmem:[%s5 + $0x8] sm:$0xff]
    %v961 = vld [vmem:[%s5 + $0x10] sm:$0xff]
    %v962 = vld [vmem:[%s5 + $0x18] sm:$0xff]
    %v963 = vld [vmem:[%s6] sm:$0x1]
    %v965 = vlaneseq
    %v966 = vshrl.u32 %v965, 7
    %v967 = vsub.s32 0, %v966
    %v968 = vrot.slane %v963, %v967
    %v971 = vsel %vm54, %v957, 0
    %v974 = vsel %vm54, %v958, 0
    %976 = vmatprep.subr.mxu0 0.0
    %977 = vmatpush1.msra.mxu0 %v959
    %978 = vmatprep.subr.mxu0 0.0
    %979 = vmatpush1.msra.mxu0 %v960
    %980 = vmatprep.subr.mxu0 0.0
    %981 = vmatpush1.msra.mxu0 %v961
    %982 = vmatprep.subr.mxu0 0.0
    %983 = vmatpush1.msra.mxu0 %v962
    %984 = vmatprep.subr.mxu0 0.0
    %985 = vmatpush1.msra.mxu0 0.0
    %986 = vmatprep.subr.mxu0 0.0
    %987 = vmatpush1.msra.mxu0 0.0
    %988 = vmatprep.subr.mxu0 0.0
    %989 = vmatpush1.msra.mxu0 0.0
    %990 = vmatprep.subr.mxu0 0.0
    %991 = vmatpush1.msra.mxu0 0.0
    %992 = vmatprep.subr.mxu0 0.0
    %993 = vmatpush1.msra.mxu0 0.0
    %994 = vmatprep.subr.mxu0 0.0
    %995 = vmatpush1.msra.mxu0 0.0
    %996 = vmatprep.subr.mxu0 0.0
    %997 = vmatpush1.msra.mxu0 0.0
    %998 = vmatprep.subr.mxu0 0.0
    %999 = vmatpush1.msra.mxu0 0.0
    %1000 = vmatprep.subr.mxu0 0.0
    %1001 = vmatpush1.msra.mxu0 0.0
    %1002 = vmatprep.subr.mxu0 0.0
    %1003 = vmatpush1.msra.mxu0 0.0
    %1004 = vmatprep.subr.mxu0 0.0
    %1005 = vmatpush1.msra.mxu0 0.0
    %1006 = vmatprep.subr.mxu0 0.0
    %1007 = vmatpush1.msra.mxu0 0.0
    %1008 = vmatprep.subr.mxu0 0.0
    %1009 = vmatpush1.msra.mxu0 0.0
    %1010 = vmatprep.subr.mxu0 0.0
    %1011 = vmatpush1.msra.mxu0 0.0
    %1012 = vmatprep.subr.mxu0 0.0
    %1013 = vmatpush1.msra.mxu0 0.0
    %1014 = vmatprep.subr.mxu0 0.0
    %1015 = vmatpush1.msra.mxu0 0.0
    %1016 = vmatprep.subr.mxu0 0.0
    %1017 = vmatpush1.msra.mxu0 0.0
    %1018 = vmatprep.subr.mxu0 0.0
    %1019 = vmatpush1.msra.mxu0 0.0
    %1020 = vmatprep.subr.mxu0 0.0
    %1021 = vmatpush1.msra.mxu0 0.0
    %1022 = vmatprep.subr.mxu0 0.0
    %1023 = vmatpush1.msra.mxu0 0.0
    %1024 = vmatprep.subr.mxu0 0.0
    %1025 = vmatpush1.msra.mxu0 0.0
    %1026 = vmatprep.subr.mxu0 0.0
    %1027 = vmatpush1.msra.mxu0 0.0
    %1028 = vmatprep.subr.mxu0 0.0
    %1029 = vmatpush1.msra.mxu0 0.0
    %1030 = vmatprep.subr.mxu0 0.0
    %1031 = vmatpush1.msra.mxu0 0.0
    %1032 = vmatprep.subr.mxu0 0.0
    %1033 = vmatpush1.msra.mxu0 0.0
    %1034 = vmatprep.subr.mxu0 0.0
    %1035 = vmatpush1.msra.mxu0 0.0
    %1036 = vmatprep.subr.mxu0 0.0
    %1037 = vmatpush1.msra.mxu0 0.0
    %1038 = vmatprep.subr.mxu0 0.0
    %1039 = vmatpush1.msra.mxu0 0.0
    %1040 = vmatprep.mubr.f32.mxu0 0.0
    %1041 = vmatmul.mubr.f32.gmra.mrb[0].mxu0 %v971
    %v1042 = vpop.f32.mrb[0].mxu0
    %v1043 = vadd.f32 %v968, %v1042
    %v1044 = vpop.f32.mrb[0].mxu0
    %1045 = vmatprep.mubr.f32.mxu0 0.0
    %1046 = vmatmul.mubr.f32.gmra.mrb[0].mxu0 %v974
    %v1047 = vpop.f32.mrb[0].mxu0
    %v1048 = vadd.f32 %v968, %v1047
    %v1049 = vpop.f32.mrb[0].mxu0
    %1050 = vdwg.mxu0
    %v1051 = vmul.f32 %v1043, 0.5
    %v1052 = vmul.f32 %v1048, 0.5
    %v1053 = vmul.f32 %v1043, 0.044715
    %v1054 = vmul.f32 %v1048, 0.044715
    %v1055 = vmul.f32 %v1053, %v1043
    %v1056 = vmul.f32 %v1054, %v1048
    %v1057 = vmul.f32 %v1055, %v1043
    %v1058 = vmul.f32 %v1056, %v1048
    %v1059 = vadd.f32 %v1043, %v1057
    %v1060 = vadd.f32 %v1048, %v1058
    %v1061 = vmul.f32 %v1059, 0.7978846
    %v1062 = vmul.f32 %v1060, 0.7978846
    %v1063 = vtanh.pop %v1061
    %v1064 = vtanh.pop %v1062
    %v1065 = vadd.f32 %v1063, 1.0
    %v1066 = vadd.f32 %v1064, 1.0
    %v1067 = vmul.f32 %v1051, %v1065
    %v1068 = vmul.f32 %v1052, %v1066
    %v1069 = vld [vmem:[%s7] sm:$0xff]
    %v1070 = vld [vmem:[%s7 + $0x8] sm:$0xff]
    %v1071 = vld [vmem:[%s7 + $0x10] sm:$0xff]
    %v1072 = vld [vmem:[%s7 + $0x18] sm:$0xff]
    %v1073 = vld [vmem:[%s7 + $0x20] sm:$0xff]
    %v1074 = vld [vmem:[%s7 + $0x28] sm:$0xff]
    %v1075 = vld [vmem:[%s7 + $0x30] sm:$0xff]
    %v1076 = vld [vmem:[%s7 + $0x38] sm:$0xff]
    %s1077 = scalar_lea.vmem %s8, 3
    %v1078 = vld [vmem:[%s1077] sm:$0x1]
    %v1080 = vlaneseq
    %v1081 = vshrl.u32 %v1080, 7
    %v1082 = vsub.s32 0, %v1081
    %v1083 = vrot.slane %v1078, %v1082
    %vm1085 = vcmask 523264
    %v1087 = vsel %vm1085, %v1067, 0
    %v1090 = vsel %vm1085, %v1068, 0
    %1092 = vmatprep.subr.mxu0 0.0
    %1093 = vmatpush1.msra.mxu0 %v1069
    %1094 = vmatprep.subr.mxu0 0.0
    %1095 = vmatpush1.msra.mxu0 %v1070
    %1096 = vmatprep.subr.mxu0 0.0
    %1097 = vmatpush1.msra.mxu0 %v1071
    %1098 = vmatprep.subr.mxu0 0.0
    %1099 = vmatpush1.msra.mxu0 %v1072
    %1100 = vmatprep.subr.mxu0 0.0
    %1101 = vmatpush1.msra.mxu0 %v1073
    %1102 = vmatprep.subr.mxu0 0.0
    %1103 = vmatpush1.msra.mxu0 %v1074
    %1104 = vmatprep.subr.mxu0 0.0
    %1105 = vmatpush1.msra.mxu0 %v1075
    %1106 = vmatprep.subr.mxu0 0.0
    %1107 = vmatpush1.msra.mxu0 %v1076
    %1108 = vmatprep.subr.mxu0 0.0
    %1109 = vmatpush1.msra.mxu0 0.0
    %1110 = vmatprep.subr.mxu0 0.0
    %1111 = vmatpush1.msra.mxu0 0.0
    %1112 = vmatprep.subr.mxu0 0.0
    %1113 = vmatpush1.msra.mxu0 0.0
    %1114 = vmatprep.subr.mxu0 0.0
    %1115 = vmatpush1.msra.mxu0 0.0
    %1116 = vmatprep.subr.mxu0 0.0
    %1117 = vmatpush1.msra.mxu0 0.0
    %1118 = vmatprep.subr.mxu0 0.0
    %1119 = vmatpush1.msra.mxu0 0.0
    %1120 = vmatprep.subr.mxu0 0.0
    %1121 = vmatpush1.msra.mxu0 0.0
    %1122 = vmatprep.subr.mxu0 0.0
    %1123 = vmatpush1.msra.mxu0 0.0
    %1124 = vmatprep.subr.mxu0 0.0
    %1125 = vmatpush1.msra.mxu0 0.0
    %1126 = vmatprep.subr.mxu0 0.0
    %1127 = vmatpush1.msra.mxu0 0.0
    %1128 = vmatprep.subr.mxu0 0.0
    %1129 = vmatpush1.msra.mxu0 0.0
    %1130 = vmatprep.subr.mxu0 0.0
    %1131 = vmatpush1.msra.mxu0 0.0
    %1132 = vmatprep.subr.mxu0 0.0
    %1133 = vmatpush1.msra.mxu0 0.0
    %1134 = vmatprep.subr.mxu0 0.0
    %1135 = vmatpush1.msra.mxu0 0.0
    %1136 = vmatprep.subr.mxu0 0.0
    %1137 = vmatpush1.msra.mxu0 0.0
    %1138 = vmatprep.subr.mxu0 0.0
    %1139 = vmatpush1.msra.mxu0 0.0
    %1140 = vmatprep.subr.mxu0 0.0
    %1141 = vmatpush1.msra.mxu0 0.0
    %1142 = vmatprep.subr.mxu0 0.0
    %1143 = vmatpush1.msra.mxu0 0.0
    %1144 = vmatprep.subr.mxu0 0.0
    %1145 = vmatpush1.msra.mxu0 0.0
    %1146 = vmatprep.subr.mxu0 0.0
    %1147 = vmatpush1.msra.mxu0 0.0
    %1148 = vmatprep.subr.mxu0 0.0
    %1149 = vmatpush1.msra.mxu0 0.0
    %1150 = vmatprep.subr.mxu0 0.0
    %1151 = vmatpush1.msra.mxu0 0.0
    %1152 = vmatprep.subr.mxu0 0.0
    %1153 = vmatpush1.msra.mxu0 0.0
    %1154 = vmatprep.subr.mxu0 0.0
    %1155 = vmatpush1.msra.mxu0 0.0
    %1156 = vmatprep.mubr.f32.mxu0 0.0
    %1157 = vmatmul.mubr.f32.gmra.mrb[0].mxu0 %v1087
    %v1158 = vpop.f32.mrb[0].mxu0
    %v1159 = vadd.f32 %v1083, %v1158
    %v1160 = vpop.f32.mrb[0].mxu0
    %1161 = vmatprep.mubr.f32.mxu0 0.0
    %1162 = vmatmul.mubr.f32.gmra.mrb[0].mxu0 %v1090
    %v1163 = vpop.f32.mrb[0].mxu0
    %v1164 = vadd.f32 %v1083, %v1163
    %v1165 = vpop.f32.mrb[0].mxu0
    %1166 = vdwg.mxu0
    %v1167 = vadd.f32 %v957, %v1159
    %v1168 = vadd.f32 %v958, %v1164
    %s1169 = scalar_lea.vmem %s8, 4
    %v1170 = vld [vmem:[%s1169] sm:$0x1]
    %s1171 = scalar_lea.vmem %s8, 5
    %v1172 = vld [vmem:[%s1171] sm:$0x1]
    %v1173 = vsel %vm54, %v1167, 0.0
    %1174 = vadd.xlane.f32.xlu0 %v1173
    %v1175 = vpop.xlane.xlu0 %1174
    %v1176 = vsel %vm54, %v1168, 0.0
    %1177 = vadd.xlane.f32.xlu0 %v1176
    %v1178 = vpop.xlane.xlu0 %1177
    %v1179 = vmul.f32 %v1175, %v922
    %v1180 = vmul.f32 %v1178, %v922
    %v1181 = vsub.f32 %v1167, %v1179
    %v1182 = vsub.f32 %v1168, %v1180
    %v1183 = vmul.f32 %v1181, %v1181
    %v1184 = vmul.f32 %v1182, %v1182
    %v1185 = vsel %vm54, %v1183, 0.0
    %1186 = vadd.xlane.f32.xlu0 %v1185
    %v1187 = vpop.xlane.xlu0 %1186
    %v1188 = vsel %vm54, %v1184, 0.0
    %1189 = vadd.xlane.f32.xlu0 %v1188
    %v1190 = vpop.xlane.xlu0 %1189
    %v1191 = vmul.f32 %v1187, %v922
    %v1192 = vmul.f32 %v1190, %v922
    %v1193 = vadd.f32 %v1191, 1e-12
    %v1194 = vadd.f32 %v1192, 1e-12
    %v1195 = vrsqrt.pop %v1193
    %v1196 = vrsqrt.pop %v1194
    %v1197 = vmul.f32 %v1181, %v1195
    %v1198 = vmul.f32 %v1182, %v1196
    %v1200 = vlaneseq
    %v1201 = vshrl.u32 %v1200, 7
    %v1202 = vsub.s32 0, %v1201
    %v1203 = vrot.slane %v1170, %v1202
    %v1205 = vmul.f32 %v1197, %v1203
    %v1206 = vmul.f32 %v1198, %v1203
    %v1208 = vlaneseq
    %v1209 = vshrl.u32 %v1208, 7
    %v1210 = vsub.s32 0, %v1209
    %v1211 = vrot.slane %v1172, %v1210
    %v1213 = vadd.f32 %v1205, %v1211
    %v1214 = vadd.f32 %v1206, %v1211
    %s1215 = scalar_lea.vmem %s2, 32
    %v1216 = vld [vmem:[%s1215] sm:$0xff]
    %v1217 = vld [vmem:[%s1215 + $0x8] sm:$0xff]
    %v1218 = vld [vmem:[%s1215 + $0x10] sm:$0xff]
    %v1219 = vld [vmem:[%s1215 + $0x18] sm:$0xff]
    %s1220 = scalar_lea.vmem %s3, 1
    %v1221 = vld [vmem:[%s1220] sm:$0x1]
    %v1223 = vlaneseq
    %v1224 = vshrl.u32 %v1223, 7
    %v1225 = vsub.s32 0, %v1224
    %v1226 = vrot.slane %v1221, %v1225
    %v1229 = vsel %vm54, %v1213, 0
    %v1232 = vsel %vm54, %v1214, 0
    %1234 = vmatprep.subr.mxu0 0.0
    %1235 = vmatpush1.msra.mxu0 %v1216
    %1236 = vmatprep.subr.mxu0 0.0
    %1237 = vmatpush1.msra.mxu0 %v1217
    %1238 = vmatprep.subr.mxu0 0.0
    %1239 = vmatpush1.msra.mxu0 %v1218
    %1240 = vmatprep.subr.mxu0 0.0
    %1241 = vmatpush1.msra.mxu0 %v1219
    %1242 = vmatprep.subr.mxu0 0.0
    %1243 = vmatpush1.msra.mxu0 0.0
    %1244 = vmatprep.subr.mxu0 0.0
    %1245 = vmatpush1.msra.mxu0 0.0
    %1246 = vmatprep.subr.mxu0 0.0
    %1247 = vmatpush1.msra.mxu0 0.0
    %1248 = vmatprep.subr.mxu0 0.0
    %1249 = vmatpush1.msra.mxu0 0.0
    %1250 = vmatprep.subr.mxu0 0.0
    %1251 = vmatpush1.msra.mxu0 0.0
    %1252 = vmatprep.subr.mxu0 0.0
    %1253 = vmatpush1.msra.mxu0 0.0
    %1254 = vmatprep.subr.mxu0 0.0
    %1255 = vmatpush1.msra.mxu0 0.0
    %1256 = vmatprep.subr.mxu0 0.0
    %1257 = vmatpush1.msra.mxu0 0.0
    %1258 = vmatprep.subr.mxu0 0.0
    %1259 = vmatpush1.msra.mxu0 0.0
    %1260 = vmatprep.subr.mxu0 0.0
    %1261 = vmatpush1.msra.mxu0 0.0
    %1262 = vmatprep.subr.mxu0 0.0
    %1263 = vmatpush1.msra.mxu0 0.0
    %1264 = vmatprep.subr.mxu0 0.0
    %1265 = vmatpush1.msra.mxu0 0.0
    %1266 = vmatprep.subr.mxu0 0.0
    %1267 = vmatpush1.msra.mxu0 0.0
    %1268 = vmatprep.subr.mxu0 0.0
    %1269 = vmatpush1.msra.mxu0 0.0
    %1270 = vmatprep.subr.mxu0 0.0
    %1271 = vmatpush1.msra.mxu0 0.0
    %1272 = vmatprep.subr.mxu0 0.0
    %1273 = vmatpush1.msra.mxu0 0.0
    %1274 = vmatprep.subr.mxu0 0.0
    %1275 = vmatpush1.msra.mxu0 0.0
    %1276 = vmatprep.subr.mxu0 0.0
    %1277 = vmatpush1.msra.mxu0 0.0
    %1278 = vmatprep.subr.mxu0 0.0
    %1279 = vmatpush1.msra.mxu0 0.0
    %1280 = vmatprep.subr.mxu0 0.0
    %1281 = vmatpush1.msra.mxu0 0.0
    %1282 = vmatprep.subr.mxu0 0.0
    %1283 = vmatpush1.msra.mxu0 0.0
    %1284 = vmatprep.subr.mxu0 0.0
    %1285 = vmatpush1.msra.mxu0 0.0
    %1286 = vmatprep.subr.mxu0 0.0
    %1287 = vmatpush1.msra.mxu0 0.0
    %1288 = vmatprep.subr.mxu0 0.0
    %1289 = vmatpush1.msra.mxu0 0.0
    %1290 = vmatprep.subr.mxu0 0.0
    %1291 = vmatpush1.msra.mxu0 0.0
    %1292 = vmatprep.subr.mxu0 0.0
    %1293 = vmatpush1.msra.mxu0 0.0
    %1294 = vmatprep.subr.mxu0 0.0
    %1295 = vmatpush1.msra.mxu0 0.0
    %1296 = vmatprep.subr.mxu0 0.0
    %1297 = vmatpush1.msra.mxu0 0.0
    %1298 = vmatprep.mubr.f32.mxu0 0.0
    %1299 = vmatmul.mubr.f32.gmra.mrb[0].mxu0 %v1229
    %v1300 = vpop.f32.mrb[0].mxu0
    %v1301 = vadd.f32 %v1226, %v1300
    %v1302 = vpop.f32.mrb[0].mxu0
    %1303 = vmatprep.mubr.f32.mxu0 0.0
    %1304 = vmatmul.mubr.f32.gmra.mrb[0].mxu0 %v1232
    %v1305 = vpop.f32.mrb[0].mxu0
    %v1306 = vadd.f32 %v1226, %v1305
    %v1307 = vpop.f32.mrb[0].mxu0
    %1308 = vdwg.mxu0
    %1310 = vrot.lane.b32.xlu0 %v1301, 96
    %v1311 = vpop.permute.xlu0 %1310
    %v1312 = vsel %vm151, %v1301, 0
    %v1314 = vsel %vm151, %v1311, 0
    %1316 = vmatprep.subr.mxu0 0.0
    %1317 = vmatpush1.xpose.msra.mxu0 %v1314
    %1318 = vmatprep.subr.mxu0 0.0
    %1319 = vmatpush1.xpose.msra.mxu0 0.0
    %1320 = vmatprep.subr.mxu0 0.0
    %1321 = vmatpush1.xpose.msra.mxu0 0.0
    %1322 = vmatprep.subr.mxu0 0.0
    %1323 = vmatpush1.xpose.msra.mxu0 0.0
    %1324 = vmatprep.subr.mxu0 0.0
    %1325 = vmatpush1.xpose.msra.mxu0 0.0
    %1326 = vmatprep.subr.mxu0 0.0
    %1327 = vmatpush1.xpose.msra.mxu0 0.0
    %1328 = vmatprep.subr.mxu0 0.0
    %1329 = vmatpush1.xpose.msra.mxu0 0.0
    %1330 = vmatprep.subr.mxu0 0.0
    %1331 = vmatpush1.xpose.msra.mxu0 0.0
    %1332 = vmatprep.subr.mxu0 0.0
    %1333 = vmatpush1.xpose.msra.mxu0 0.0
    %1334 = vmatprep.subr.mxu0 0.0
    %1335 = vmatpush1.xpose.msra.mxu0 0.0
    %1336 = vmatprep.subr.mxu0 0.0
    %1337 = vmatpush1.xpose.msra.mxu0 0.0
    %1338 = vmatprep.subr.mxu0 0.0
    %1339 = vmatpush1.xpose.msra.mxu0 0.0
    %1340 = vmatprep.subr.mxu0 0.0
    %1341 = vmatpush1.xpose.msra.mxu0 0.0
    %1342 = vmatprep.subr.mxu0 0.0
    %1343 = vmatpush1.xpose.msra.mxu0 0.0
    %1344 = vmatprep.subr.mxu0 0.0
    %1345 = vmatpush1.xpose.msra.mxu0 0.0
    %1346 = vmatprep.subr.mxu0 0.0
    %1347 = vmatpush1.xpose.msra.mxu0 0.0
    %1348 = vmatprep.subr.mxu0 0.0
    %1349 = vmatpush1.xpose.msra.mxu0 0.0
    %1350 = vmatprep.subr.mxu0 0.0
    %1351 = vmatpush1.xpose.msra.mxu0 0.0
    %1352 = vmatprep.subr.mxu0 0.0
    %1353 = vmatpush1.xpose.msra.mxu0 0.0
    %1354 = vmatprep.subr.mxu0 0.0
    %1355 = vmatpush1.xpose.msra.mxu0 0.0
    %1356 = vmatprep.subr.mxu0 0.0
    %1357 = vmatpush1.xpose.msra.mxu0 0.0
    %1358 = vmatprep.subr.mxu0 0.0
    %1359 = vmatpush1.xpose.msra.mxu0 0.0
    %1360 = vmatprep.subr.mxu0 0.0
    %1361 = vmatpush1.xpose.msra.mxu0 0.0
    %1362 = vmatprep.subr.mxu0 0.0
    %1363 = vmatpush1.xpose.msra.mxu0 0.0
    %1364 = vmatprep.subr.mxu0 0.0
    %1365 = vmatpush1.xpose.msra.mxu0 0.0
    %1366 = vmatprep.subr.mxu0 0.0
    %1367 = vmatpush1.xpose.msra.mxu0 0.0
    %1368 = vmatprep.subr.mxu0 0.0
    %1369 = vmatpush1.xpose.msra.mxu0 0.0
    %1370 = vmatprep.subr.mxu0 0.0
    %1371 = vmatpush1.xpose.msra.mxu0 0.0
    %1372 = vmatprep.subr.mxu0 0.0
    %1373 = vmatpush1.xpose.msra.mxu0 0.0
    %1374 = vmatprep.subr.mxu0 0.0
    %1375 = vmatpush1.xpose.msra.mxu0 0.0
    %1376 = vmatprep.subr.mxu0 0.0
    %1377 = vmatpush1.xpose.msra.mxu0 0.0
    %1378 = vmatprep.subr.mxu0 0.0
    %1379 = vmatpush1.xpose.msra.mxu0 0.0
    %1380 = vmatprep.mubr.f32.mxu0 0.0
    %1381 = vmatmul.mubr.f32.gmra.mrb[0].mxu0 %v1312
    %v1382 = vpop.f32.mrb[0].mxu0
    %v1383 = vadd.f32 %v141, %v1382
    %v1384 = vpop.f32.mrb[0].mxu0
    %1385 = vdwg.mxu0
    %1387 = vrot.lane.b32.xlu0 %v1306, 96
    %v1388 = vpop.permute.xlu0 %1387
    %v1389 = vsel %vm151, %v1306, 0
    %v1391 = vsel %vm151, %v1388, 0
    %1393 = vmatprep.subr.mxu0 0.0
    %1394 = vmatpush1.xpose.msra.mxu0 %v1391
    %1395 = vmatprep.subr.mxu0 0.0
    %1396 = vmatpush1.xpose.msra.mxu0 0.0
    %1397 = vmatprep.subr.mxu0 0.0
    %1398 = vmatpush1.xpose.msra.mxu0 0.0
    %1399 = vmatprep.subr.mxu0 0.0
    %1400 = vmatpush1.xpose.msra.mxu0 0.0
    %1401 = vmatprep.subr.mxu0 0.0
    %1402 = vmatpush1.xpose.msra.mxu0 0.0
    %1403 = vmatprep.subr.mxu0 0.0
    %1404 = vmatpush1.xpose.msra.mxu0 0.0
    %1405 = vmatprep.subr.mxu0 0.0
    %1406 = vmatpush1.xpose.msra.mxu0 0.0
    %1407 = vmatprep.subr.mxu0 0.0
    %1408 = vmatpush1.xpose.msra.mxu0 0.0
    %1409 = vmatprep.subr.mxu0 0.0
    %1410 = vmatpush1.xpose.msra.mxu0 0.0
    %1411 = vmatprep.subr.mxu0 0.0
    %1412 = vmatpush1.xpose.msra.mxu0 0.0
    %1413 = vmatprep.subr.mxu0 0.0
    %1414 = vmatpush1.xpose.msra.mxu0 0.0
    %1415 = vmatprep.subr.mxu0 0.0
    %1416 = vmatpush1.xpose.msra.mxu0 0.0
    %1417 = vmatprep.subr.mxu0 0.0
    %1418 = vmatpush1.xpose.msra.mxu0 0.0
    %1419 = vmatprep.subr.mxu0 0.0
    %1420 = vmatpush1.xpose.msra.mxu0 0.0
    %1421 = vmatprep.subr.mxu0 0.0
    %1422 = vmatpush1.xpose.msra.mxu0 0.0
    %1423 = vmatprep.subr.mxu0 0.0
    %1424 = vmatpush1.xpose.msra.mxu0 0.0
    %1425 = vmatprep.subr.mxu0 0.0
    %1426 = vmatpush1.xpose.msra.mxu0 0.0
    %1427 = vmatprep.subr.mxu0 0.0
    %1428 = vmatpush1.xpose.msra.mxu0 0.0
    %1429 = vmatprep.subr.mxu0 0.0
    %1430 = vmatpush1.xpose.msra.mxu0 0.0
    %1431 = vmatprep.subr.mxu0 0.0
    %1432 = vmatpush1.xpose.msra.mxu0 0.0
    %1433 = vmatprep.subr.mxu0 0.0
    %1434 = vmatpush1.xpose.msra.mxu0 0.0
    %1435 = vmatprep.subr.mxu0 0.0
    %1436 = vmatpush1.xpose.msra.mxu0 0.0
    %1437 = vmatprep.subr.mxu0 0.0
    %1438 = vmatpush1.xpose.msra.mxu0 0.0
    %1439 = vmatprep.subr.mxu0 0.0
    %1440 = vmatpush1.xpose.msra.mxu0 0.0
    %1441 = vmatprep.subr.mxu0 0.0
    %1442 = vmatpush1.xpose.msra.mxu0 0.0
    %1443 = vmatprep.subr.mxu0 0.0
    %1444 = vmatpush1.xpose.msra.mxu0 0.0
    %1445 = vmatprep.subr.mxu0 0.0
    %1446 = vmatpush1.xpose.msra.mxu0 0.0
    %1447 = vmatprep.subr.mxu0 0.0
    %1448 = vmatpush1.xpose.msra.mxu0 0.0
    %1449 = vmatprep.subr.mxu0 0.0
    %1450 = vmatpush1.xpose.msra.mxu0 0.0
    %1451 = vmatprep.subr.mxu0 0.0
    %1452 = vmatpush1.xpose.msra.mxu0 0.0
    %1453 = vmatprep.subr.mxu0 0.0
    %1454 = vmatpush1.xpose.msra.mxu0 0.0
    %1455 = vmatprep.subr.mxu0 0.0
    %1456 = vmatpush1.xpose.msra.mxu0 0.0
    %1457 = vmatprep.mubr.f32.mxu0 0.0
    %1458 = vmatmul.mubr.f32.gmra.mrb[0].mxu0 %v1389
    %v1459 = vpop.f32.mrb[0].mxu0
    %v1460 = vadd.f32 %v145, %v1459
    %v1461 = vpop.f32.mrb[0].mxu0
    %1462 = vdwg.mxu0
    %v1463 = vsel %vm303, %v1383, -inf
    %1464 = vmax.xlane.f32.xlu0 %v1463
    %v1465 = vpop.xlane.xlu0 %1464
    %v1466 = vsel %vm303, %v1460, -inf
    %1467 = vmax.xlane.f32.xlu0 %v1466
    %v1468 = vpop.xlane.xlu0 %1467
    %v1469 = vsub.f32 %v1383, %v1465
    %v1470 = vsub.f32 %v1460, %v1468
    %v1471 = vmul.f32 %v1469, 1.442695
    %v1472 = vpow.pop %v1471
    %v1473 = vmul.f32 %v1470, 1.442695
    %v1474 = vpow.pop %v1473
    %v1475 = vsel %vm303, %v1472, 0.0
    %1476 = vadd.xlane.f32.xlu0 %v1475
    %v1477 = vpop.xlane.xlu0 %1476
    %v1478 = vsel %vm303, %v1474, 0.0
    %1479 = vadd.xlane.f32.xlu0 %v1478
    %v1480 = vpop.xlane.xlu0 %1479
    %v1481 = vrcp.pop %v1477
    %v1482 = vrcp.pop %v1480
    %v1483 = vmul.f32 %v1472, %v1481
    %v1484 = vmul.f32 %v1474, %v1482
    %1485 = vrot.lane.b32.xlu0 %v1301, 64
    %v1486 = vpop.permute.xlu0 %1485
    %v1489 = vsel %vm303, %v1483, 0
    %1491 = vmatprep.subr.mxu0 0.0
    %1492 = vmatpush1.msra.mxu0 %v1486
    %1493 = vmatprep.subr.mxu0 0.0
    %1494 = vmatpush1.msra.mxu0 0.0
    %1495 = vmatprep.subr.mxu0 0.0
    %1496 = vmatpush1.msra.mxu0 0.0
    %1497 = vmatprep.subr.mxu0 0.0
    %1498 = vmatpush1.msra.mxu0 0.0
    %1499 = vmatprep.subr.mxu0 0.0
    %1500 = vmatpush1.msra.mxu0 0.0
    %1501 = vmatprep.subr.mxu0 0.0
    %1502 = vmatpush1.msra.mxu0 0.0
    %1503 = vmatprep.subr.mxu0 0.0
    %1504 = vmatpush1.msra.mxu0 0.0
    %1505 = vmatprep.subr.mxu0 0.0
    %1506 = vmatpush1.msra.mxu0 0.0
    %1507 = vmatprep.subr.mxu0 0.0
    %1508 = vmatpush1.msra.mxu0 0.0
    %1509 = vmatprep.subr.mxu0 0.0
    %1510 = vmatpush1.msra.mxu0 0.0
    %1511 = vmatprep.subr.mxu0 0.0
    %1512 = vmatpush1.msra.mxu0 0.0
    %1513 = vmatprep.subr.mxu0 0.0
    %1514 = vmatpush1.msra.mxu0 0.0
    %1515 = vmatprep.subr.mxu0 0.0
    %1516 = vmatpush1.msra.mxu0 0.0
    %1517 = vmatprep.subr.mxu0 0.0
    %1518 = vmatpush1.msra.mxu0 0.0
    %1519 = vmatprep.subr.mxu0 0.0
    %1520 = vmatpush1.msra.mxu0 0.0
    %1521 = vmatprep.subr.mxu0 0.0
    %1522 = vmatpush1.msra.mxu0 0.0
    %1523 = vmatprep.subr.mxu0 0.0
    %1524 = vmatpush1.msra.mxu0 0.0
    %1525 = vmatprep.subr.mxu0 0.0
    %1526 = vmatpush1.msra.mxu0 0.0
    %1527 = vmatprep.subr.mxu0 0.0
    %1528 = vmatpush1.msra.mxu0 0.0
    %1529 = vmatprep.subr.mxu0 0.0
    %1530 = vmatpush1.msra.mxu0 0.0
    %1531 = vmatprep.subr.mxu0 0.0
    %1532 = vmatpush1.msra.mxu0 0.0
    %1533 = vmatprep.subr.mxu0 0.0
    %1534 = vmatpush1.msra.mxu0 0.0
    %1535 = vmatprep.subr.mxu0 0.0
    %1536 = vmatpush1.msra.mxu0 0.0
    %1537 = vmatprep.subr.mxu0 0.0
    %1538 = vmatpush1.msra.mxu0 0.0
    %1539 = vmatprep.subr.mxu0 0.0
    %1540 = vmatpush1.msra.mxu0 0.0
    %1541 = vmatprep.subr.mxu0 0.0
    %1542 = vmatpush1.msra.mxu0 0.0
    %1543 = vmatprep.subr.mxu0 0.0
    %1544 = vmatpush1.msra.mxu0 0.0
    %1545 = vmatprep.subr.mxu0 0.0
    %1546 = vmatpush1.msra.mxu0 0.0
    %1547 = vmatprep.subr.mxu0 0.0
    %1548 = vmatpush1.msra.mxu0 0.0
    %1549 = vmatprep.subr.mxu0 0.0
    %1550 = vmatpush1.msra.mxu0 0.0
    %1551 = vmatprep.subr.mxu0 0.0
    %1552 = vmatpush1.msra.mxu0 0.0
    %1553 = vmatprep.subr.mxu0 0.0
    %1554 = vmatpush1.msra.mxu0 0.0
    %1555 = vmatprep.mubr.f32.mxu0 0.0
    %1556 = vmatmul.mubr.f32.gmra.mrb[0].mxu0 %v1489
    %v1557 = vpop.f32.mrb[0].mxu0
    %v1558 = vadd.f32 0.0, %v1557
    %v1559 = vpop.f32.mrb[0].mxu0
    %1560 = vdwg.mxu0
    %1561 = vrot.lane.b32.xlu0 %v1306, 64
    %v1562 = vpop.permute.xlu0 %1561
    %v1565 = vsel %vm303, %v1484, 0
    %1567 = vmatprep.subr.mxu0 0.0
    %1568 = vmatpush1.msra.mxu0 %v1562
    %1569 = vmatprep.subr.mxu0 0.0
    %1570 = vmatpush1.msra.mxu0 0.0
    %1571 = vmatprep.subr.mxu0 0.0
    %1572 = vmatpush1.msra.mxu0 0.0
    %1573 = vmatprep.subr.mxu0 0.0
    %1574 = vmatpush1.msra.mxu0 0.0
    %1575 = vmatprep.subr.mxu0 0.0
    %1576 = vmatpush1.msra.mxu0 0.0
    %1577 = vmatprep.subr.mxu0 0.0
    %1578 = vmatpush1.msra.mxu0 0.0
    %1579 = vmatprep.subr.mxu0 0.0
    %1580 = vmatpush1.msra.mxu0 0.0
    %1581 = vmatprep.subr.mxu0 0.0
    %1582 = vmatpush1.msra.mxu0 0.0
    %1583 = vmatprep.subr.mxu0 0.0
    %1584 = vmatpush1.msra.mxu0 0.0
    %1585 = vmatprep.subr.mxu0 0.0
    %1586 = vmatpush1.msra.mxu0 0.0
    %1587 = vmatprep.subr.mxu0 0.0
    %1588 = vmatpush1.msra.mxu0 0.0
    %1589 = vmatprep.subr.mxu0 0.0
    %1590 = vmatpush1.msra.mxu0 0.0
    %1591 = vmatprep.subr.mxu0 0.0
    %1592 = vmatpush1.msra.mxu0 0.0
    %1593 = vmatprep.subr.mxu0 0.0
    %1594 = vmatpush1.msra.mxu0 0.0
    %1595 = vmatprep.subr.mxu0 0.0
    %1596 = vmatpush1.msra.mxu0 0.0
    %1597 = vmatprep.subr.mxu0 0.0
    %1598 = vmatpush1.msra.mxu0 0.0
    %1599 = vmatprep.subr.mxu0 0.0
    %1600 = vmatpush1.msra.mxu0 0.0
    %1601 = vmatprep.subr.mxu0 0.0
    %1602 = vmatpush1.msra.mxu0 0.0
    %1603 = vmatprep.subr.mxu0 0.0
    %1604 = vmatpush1.msra.mxu0 0.0
    %1605 = vmatprep.subr.mxu0 0.0
    %1606 = vmatpush1.msra.mxu0 0.0
    %1607 = vmatprep.subr.mxu0 0.0
    %1608 = vmatpush1.msra.mxu0 0.0
    %1609 = vmatprep.subr.mxu0 0.0
    %1610 = vmatpush1.msra.mxu0 0.0
    %1611 = vmatprep.subr.mxu0 0.0
    %1612 = vmatpush1.msra.mxu0 0.0
    %1613 = vmatprep.subr.mxu0 0.0
    %1614 = vmatpush1.msra.mxu0 0.0
    %1615 = vmatprep.subr.mxu0 0.0
    %1616 = vmatpush1.msra.mxu0 0.0
    %1617 = vmatprep.subr.mxu0 0.0
    %1618 = vmatpush1.msra.mxu0 0.0
    %1619 = vmatprep.subr.mxu0 0.0
    %1620 = vmatpush1.msra.mxu0 0.0
    %1621 = vmatprep.subr.mxu0 0.0
    %1622 = vmatpush1.msra.mxu0 0.0
    %1623 = vmatprep.subr.mxu0 0.0
    %1624 = vmatpush1.msra.mxu0 0.0
    %1625 = vmatprep.subr.mxu0 0.0
    %1626 = vmatpush1.msra.mxu0 0.0
    %1627 = vmatprep.subr.mxu0 0.0
    %1628 = vmatpush1.msra.mxu0 0.0
    %1629 = vmatprep.subr.mxu0 0.0
    %1630 = vmatpush1.msra.mxu0 0.0
    %1631 = vmatprep.mubr.f32.mxu0 0.0
    %1632 = vmatmul.mubr.f32.gmra.mrb[0].mxu0 %v1565
    %v1633 = vpop.f32.mrb[0].mxu0
    %v1634 = vadd.f32 0.0, %v1633
    %v1635 = vpop.f32.mrb[0].mxu0
    %1636 = vdwg.mxu0
    %1637 = vrot.lane.b32.xlu0 %v1301, 112
    %v1638 = vpop.permute.xlu0 %1637
    %1639 = vrot.lane.b32.xlu0 %v1301, 80
    %v1640 = vpop.permute.xlu0 %1639
    %v1641 = vsel %vm151, %v1638, 0
    %v1643 = vsel %vm151, %v1640, 0
    %1645 = vmatprep.subr.mxu0 0.0
    %1646 = vmatpush1.xpose.msra.mxu0 %v1643
    %1647 = vmatprep.subr.mxu0 0.0
    %1648 = vmatpush1.xpose.msra.mxu0 0.0
    %1649 = vmatprep.subr.mxu0 0.0
    %1650 = vmatpush1.xpose.msra.mxu0 0.0
    %1651 = vmatprep.subr.mxu0 0.0
    %1652 = vmatpush1.xpose.msra.mxu0 0.0
    %1653 = vmatprep.subr.mxu0 0.0
    %1654 = vmatpush1.xpose.msra.mxu0 0.0
    %1655 = vmatprep.subr.mxu0 0.0
    %1656 = vmatpush1.xpose.msra.mxu0 0.0
    %1657 = vmatprep.subr.mxu0 0.0
    %1658 = vmatpush1.xpose.msra.mxu0 0.0
    %1659 = vmatprep.subr.mxu0 0.0
    %1660 = vmatpush1.xpose.msra.mxu0 0.0
    %1661 = vmatprep.subr.mxu0 0.0
    %1662 = vmatpush1.xpose.msra.mxu0 0.0
    %1663 = vmatprep.subr.mxu0 0.0
    %1664 = vmatpush1.xpose.msra.mxu0 0.0
    %1665 = vmatprep.subr.mxu0 0.0
    %1666 = vmatpush1.xpose.msra.mxu0 0.0
    %1667 = vmatprep.subr.mxu0 0.0
    %1668 = vmatpush1.xpose.msra.mxu0 0.0
    %1669 = vmatprep.subr.mxu0 0.0
    %1670 = vmatpush1.xpose.msra.mxu0 0.0
    %1671 = vmatprep.subr.mxu0 0.0
    %1672 = vmatpush1.xpose.msra.mxu0 0.0
    %1673 = vmatprep.subr.mxu0 0.0
    %1674 = vmatpush1.xpose.msra.mxu0 0.0
    %1675 = vmatprep.subr.mxu0 0.0
    %1676 = vmatpush1.xpose.msra.mxu0 0.0
    %1677 = vmatprep.subr.mxu0 0.0
    %1678 = vmatpush1.xpose.msra.mxu0 0.0
    %1679 = vmatprep.subr.mxu0 0.0
    %1680 = vmatpush1.xpose.msra.mxu0 0.0
    %1681 = vmatprep.subr.mxu0 0.0
    %1682 = vmatpush1.xpose.msra.mxu0 0.0
    %1683 = vmatprep.subr.mxu0 0.0
    %1684 = vmatpush1.xpose.msra.mxu0 0.0
    %1685 = vmatprep.subr.mxu0 0.0
    %1686 = vmatpush1.xpose.msra.mxu0 0.0
    %1687 = vmatprep.subr.mxu0 0.0
    %1688 = vmatpush1.xpose.msra.mxu0 0.0
    %1689 = vmatprep.subr.mxu0 0.0
    %1690 = vmatpush1.xpose.msra.mxu0 0.0
    %1691 = vmatprep.subr.mxu0 0.0
    %1692 = vmatpush1.xpose.msra.mxu0 0.0
    %1693 = vmatprep.subr.mxu0 0.0
    %1694 = vmatpush1.xpose.msra.mxu0 0.0
    %1695 = vmatprep.subr.mxu0 0.0
    %1696 = vmatpush1.xpose.msra.mxu0 0.0
    %1697 = vmatprep.subr.mxu0 0.0
    %1698 = vmatpush1.xpose.msra.mxu0 0.0
    %1699 = vmatprep.subr.mxu0 0.0
    %1700 = vmatpush1.xpose.msra.mxu0 0.0
    %1701 = vmatprep.subr.mxu0 0.0
    %1702 = vmatpush1.xpose.msra.mxu0 0.0
    %1703 = vmatprep.subr.mxu0 0.0
    %1704 = vmatpush1.xpose.msra.mxu0 0.0
    %1705 = vmatprep.subr.mxu0 0.0
    %1706 = vmatpush1.xpose.msra.mxu0 0.0
    %1707 = vmatprep.subr.mxu0 0.0
    %1708 = vmatpush1.xpose.msra.mxu0 0.0
    %1709 = vmatprep.mubr.f32.mxu0 0.0
    %1710 = vmatmul.mubr.f32.gmra.mrb[0].mxu0 %v1641
    %v1711 = vpop.f32.mrb[0].mxu0
    %v1712 = vadd.f32 %v141, %v1711
    %v1713 = vpop.f32.mrb[0].mxu0
    %1714 = vdwg.mxu0
    %1715 = vrot.lane.b32.xlu0 %v1306, 112
    %v1716 = vpop.permute.xlu0 %1715
    %1717 = vrot.lane.b32.xlu0 %v1306, 80
    %v1718 = vpop.permute.xlu0 %1717
    %v1719 = vsel %vm151, %v1716, 0
    %v1721 = vsel %vm151, %v1718, 0
    %1723 = vmatprep.subr.mxu0 0.0
    %1724 = vmatpush1.xpose.msra.mxu0 %v1721
    %1725 = vmatprep.subr.mxu0 0.0
    %1726 = vmatpush1.xpose.msra.mxu0 0.0
    %1727 = vmatprep.subr.mxu0 0.0
    %1728 = vmatpush1.xpose.msra.mxu0 0.0
    %1729 = vmatprep.subr.mxu0 0.0
    %1730 = vmatpush1.xpose.msra.mxu0 0.0
    %1731 = vmatprep.subr.mxu0 0.0
    %1732 = vmatpush1.xpose.msra.mxu0 0.0
    %1733 = vmatprep.subr.mxu0 0.0
    %1734 = vmatpush1.xpose.msra.mxu0 0.0
    %1735 = vmatprep.subr.mxu0 0.0
    %1736 = vmatpush1.xpose.msra.mxu0 0.0
    %1737 = vmatprep.subr.mxu0 0.0
    %1738 = vmatpush1.xpose.msra.mxu0 0.0
    %1739 = vmatprep.subr.mxu0 0.0
    %1740 = vmatpush1.xpose.msra.mxu0 0.0
    %1741 = vmatprep.subr.mxu0 0.0
    %1742 = vmatpush1.xpose.msra.mxu0 0.0
    %1743 = vmatprep.subr.mxu0 0.0
    %1744 = vmatpush1.xpose.msra.mxu0 0.0
    %1745 = vmatprep.subr.mxu0 0.0
    %1746 = vmatpush1.xpose.msra.mxu0 0.0
    %1747 = vmatprep.subr.mxu0 0.0
    %1748 = vmatpush1.xpose.msra.mxu0 0.0
    %1749 = vmatprep.subr.mxu0 0.0
    %1750 = vmatpush1.xpose.msra.mxu0 0.0
    %1751 = vmatprep.subr.mxu0 0.0
    %1752 = vmatpush1.xpose.msra.mxu0 0.0
    %1753 = vmatprep.subr.mxu0 0.0
    %1754 = vmatpush1.xpose.msra.mxu0 0.0
    %1755 = vmatprep.subr.mxu0 0.0
    %1756 = vmatpush1.xpose.msra.mxu0 0.0
    %1757 = vmatprep.subr.mxu0 0.0
    %1758 = vmatpush1.xpose.msra.mxu0 0.0
    %1759 = vmatprep.subr.mxu0 0.0
    %1760 = vmatpush1.xpose.msra.mxu0 0.0
    %1761 = vmatprep.subr.mxu0 0.0
    %1762 = vmatpush1.xpose.msra.mxu0 0.0
    %1763 = vmatprep.subr.mxu0 0.0
    %1764 = vmatpush1.xpose.msra.mxu0 0.0
    %1765 = vmatprep.subr.mxu0 0.0
    %1766 = vmatpush1.xpose.msra.mxu0 0.0
    %1767 = vmatprep.subr.mxu0 0.0
    %1768 = vmatpush1.xpose.msra.mxu0 0.0
    %1769 = vmatprep.subr.mxu0 0.0
    %1770 = vmatpush1.xpose.msra.mxu0 0.0
    %1771 = vmatprep.subr.mxu0 0.0
    %1772 = vmatpush1.xpose.msra.mxu0 0.0
    %1773 = vmatprep.subr.mxu0 0.0
    %1774 = vmatpush1.xpose.msra.mxu0 0.0
    %1775 = vmatprep.subr.mxu0 0.0
    %1776 = vmatpush1.xpose.msra.mxu0 0.0
    %1777 = vmatprep.subr.mxu0 0.0
    %1778 = vmatpush1.xpose.msra.mxu0 0.0
    %1779 = vmatprep.subr.mxu0 0.0
    %1780 = vmatpush1.xpose.msra.mxu0 0.0
    %1781 = vmatprep.subr.mxu0 0.0
    %1782 = vmatpush1.xpose.msra.mxu0 0.0
    %1783 = vmatprep.subr.mxu0 0.0
    %1784 = vmatpush1.xpose.msra.mxu0 0.0
    %1785 = vmatprep.subr.mxu0 0.0
    %1786 = vmatpush1.xpose.msra.mxu0 0.0
    %1787 = vmatprep.mubr.f32.mxu0 0.0
    %1788 = vmatmul.mubr.f32.gmra.mrb[0].mxu0 %v1719
    %v1789 = vpop.f32.mrb[0].mxu0
    %v1790 = vadd.f32 %v145, %v1789
    %v1791 = vpop.f32.mrb[0].mxu0
    %1792 = vdwg.mxu0
    %v1793 = vsel %vm303, %v1712, -inf
    %1794 = vmax.xlane.f32.xlu0 %v1793
    %v1795 = vpop.xlane.xlu0 %1794
    %v1796 = vsel %vm303, %v1790, -inf
    %1797 = vmax.xlane.f32.xlu0 %v1796
    %v1798 = vpop.xlane.xlu0 %1797
    %v1799 = vsub.f32 %v1712, %v1795
    %v1800 = vsub.f32 %v1790, %v1798
    %v1801 = vmul.f32 %v1799, 1.442695
    %v1802 = vpow.pop %v1801
    %v1803 = vmul.f32 %v1800, 1.442695
    %v1804 = vpow.pop %v1803
    %v1805 = vsel %vm303, %v1802, 0.0
    %1806 = vadd.xlane.f32.xlu0 %v1805
    %v1807 = vpop.xlane.xlu0 %1806
    %v1808 = vsel %vm303, %v1804, 0.0
    %1809 = vadd.xlane.f32.xlu0 %v1808
    %v1810 = vpop.xlane.xlu0 %1809
    %v1811 = vrcp.pop %v1807
    %v1812 = vrcp.pop %v1810
    %v1813 = vmul.f32 %v1802, %v1811
    %v1814 = vmul.f32 %v1804, %v1812
    %1815 = vrot.lane.b32.xlu0 %v1301, 48
    %v1816 = vpop.permute.xlu0 %1815
    %v1819 = vsel %vm303, %v1813, 0
    %1821 = vmatprep.subr.mxu0 0.0
    %1822 = vmatpush1.msra.mxu0 %v1816
    %1823 = vmatprep.subr.mxu0 0.0
    %1824 = vmatpush1.msra.mxu0 0.0
    %1825 = vmatprep.subr.mxu0 0.0
    %1826 = vmatpush1.msra.mxu0 0.0
    %1827 = vmatprep.subr.mxu0 0.0
    %1828 = vmatpush1.msra.mxu0 0.0
    %1829 = vmatprep.subr.mxu0 0.0
    %1830 = vmatpush1.msra.mxu0 0.0
    %1831 = vmatprep.subr.mxu0 0.0
    %1832 = vmatpush1.msra.mxu0 0.0
    %1833 = vmatprep.subr.mxu0 0.0
    %1834 = vmatpush1.msra.mxu0 0.0
    %1835 = vmatprep.subr.mxu0 0.0
    %1836 = vmatpush1.msra.mxu0 0.0
    %1837 = vmatprep.subr.mxu0 0.0
    %1838 = vmatpush1.msra.mxu0 0.0
    %1839 = vmatprep.subr.mxu0 0.0
    %1840 = vmatpush1.msra.mxu0 0.0
    %1841 = vmatprep.subr.mxu0 0.0
    %1842 = vmatpush1.msra.mxu0 0.0
    %1843 = vmatprep.subr.mxu0 0.0
    %1844 = vmatpush1.msra.mxu0 0.0
    %1845 = vmatprep.subr.mxu0 0.0
    %1846 = vmatpush1.msra.mxu0 0.0
    %1847 = vmatprep.subr.mxu0 0.0
    %1848 = vmatpush1.msra.mxu0 0.0
    %1849 = vmatprep.subr.mxu0 0.0
    %1850 = vmatpush1.msra.mxu0 0.0
    %1851 = vmatprep.subr.mxu0 0.0
    %1852 = vmatpush1.msra.mxu0 0.0
    %1853 = vmatprep.subr.mxu0 0.0
    %1854 = vmatpush1.msra.mxu0 0.0
    %1855 = vmatprep.subr.mxu0 0.0
    %1856 = vmatpush1.msra.mxu0 0.0
    %1857 = vmatprep.subr.mxu0 0.0
    %1858 = vmatpush1.msra.mxu0 0.0
    %1859 = vmatprep.subr.mxu0 0.0
    %1860 = vmatpush1.msra.mxu0 0.0
    %1861 = vmatprep.subr.mxu0 0.0
    %1862 = vmatpush1.msra.mxu0 0.0
    %1863 = vmatprep.subr.mxu0 0.0
    %1864 = vmatpush1.msra.mxu0 0.0
    %1865 = vmatprep.subr.mxu0 0.0
    %1866 = vmatpush1.msra.mxu0 0.0
    %1867 = vmatprep.subr.mxu0 0.0
    %1868 = vmatpush1.msra.mxu0 0.0
    %1869 = vmatprep.subr.mxu0 0.0
    %1870 = vmatpush1.msra.mxu0 0.0
    %1871 = vmatprep.subr.mxu0 0.0
    %1872 = vmatpush1.msra.mxu0 0.0
    %1873 = vmatprep.subr.mxu0 0.0
    %1874 = vmatpush1.msra.mxu0 0.0
    %1875 = vmatprep.subr.mxu0 0.0
    %1876 = vmatpush1.msra.mxu0 0.0
    %1877 = vmatprep.subr.mxu0 0.0
    %1878 = vmatpush1.msra.mxu0 0.0
    %1879 = vmatprep.subr.mxu0 0.0
    %1880 = vmatpush1.msra.mxu0 0.0
    %1881 = vmatprep.subr.mxu0 0.0
    %1882 = vmatpush1.msra.mxu0 0.0
    %1883 = vmatprep.subr.mxu0 0.0
    %1884 = vmatpush1.msra.mxu0 0.0
    %1885 = vmatprep.mubr.f32.mxu0 0.0
    %1886 = vmatmul.mubr.f32.gmra.mrb[0].mxu0 %v1819
    %v1887 = vpop.f32.mrb[0].mxu0
    %v1888 = vadd.f32 0.0, %v1887
    %v1889 = vpop.f32.mrb[0].mxu0
    %1890 = vdwg.mxu0
    %1891 = vrot.lane.b32.xlu0 %v1306, 48
    %v1892 = vpop.permute.xlu0 %1891
    %v1895 = vsel %vm303, %v1814, 0
    %1897 = vmatprep.subr.mxu0 0.0
    %1898 = vmatpush1.msra.mxu0 %v1892
    %1899 = vmatprep.subr.mxu0 0.0
    %1900 = vmatpush1.msra.mxu0 0.0
    %1901 = vmatprep.subr.mxu0 0.0
    %1902 = vmatpush1.msra.mxu0 0.0
    %1903 = vmatprep.subr.mxu0 0.0
    %1904 = vmatpush1.msra.mxu0 0.0
    %1905 = vmatprep.subr.mxu0 0.0
    %1906 = vmatpush1.msra.mxu0 0.0
    %1907 = vmatprep.subr.mxu0 0.0
    %1908 = vmatpush1.msra.mxu0 0.0
    %1909 = vmatprep.subr.mxu0 0.0
    %1910 = vmatpush1.msra.mxu0 0.0
    %1911 = vmatprep.subr.mxu0 0.0
    %1912 = vmatpush1.msra.mxu0 0.0
    %1913 = vmatprep.subr.mxu0 0.0
    %1914 = vmatpush1.msra.mxu0 0.0
    %1915 = vmatprep.subr.mxu0 0.0
    %1916 = vmatpush1.msra.mxu0 0.0
    %1917 = vmatprep.subr.mxu0 0.0
    %1918 = vmatpush1.msra.mxu0 0.0
    %1919 = vmatprep.subr.mxu0 0.0
    %1920 = vmatpush1.msra.mxu0 0.0
    %1921 = vmatprep.subr.mxu0 0.0
    %1922 = vmatpush1.msra.mxu0 0.0
    %1923 = vmatprep.subr.mxu0 0.0
    %1924 = vmatpush1.msra.mxu0 0.0
    %1925 = vmatprep.subr.mxu0 0.0
    %1926 = vmatpush1.msra.mxu0 0.0
    %1927 = vmatprep.subr.mxu0 0.0
    %1928 = vmatpush1.msra.mxu0 0.0
    %1929 = vmatprep.subr.mxu0 0.0
    %1930 = vmatpush1.msra.mxu0 0.0
    %1931 = vmatprep.subr.mxu0 0.0
    %1932 = vmatpush1.msra.mxu0 0.0
    %1933 = vmatprep.subr.mxu0 0.0
    %1934 = vmatpush1.msra.mxu0 0.0
    %1935 = vmatprep.subr.mxu0 0.0
    %1936 = vmatpush1.msra.mxu0 0.0
    %1937 = vmatprep.subr.mxu0 0.0
    %1938 = vmatpush1.msra.mxu0 0.0
    %1939 = vmatprep.subr.mxu0 0.0
    %1940 = vmatpush1.msra.mxu0 0.0
    %1941 = vmatprep.subr.mxu0 0.0
    %1942 = vmatpush1.msra.mxu0 0.0
    %1943 = vmatprep.subr.mxu0 0.0
    %1944 = vmatpush1.msra.mxu0 0.0
    %1945 = vmatprep.subr.mxu0 0.0
    %1946 = vmatpush1.msra.mxu0 0.0
    %1947 = vmatprep.subr.mxu0 0.0
    %1948 = vmatpush1.msra.mxu0 0.0
    %1949 = vmatprep.subr.mxu0 0.0
    %1950 = vmatpush1.msra.mxu0 0.0
    %1951 = vmatprep.subr.mxu0 0.0
    %1952 = vmatpush1.msra.mxu0 0.0
    %1953 = vmatprep.subr.mxu0 0.0
    %1954 = vmatpush1.msra.mxu0 0.0
    %1955 = vmatprep.subr.mxu0 0.0
    %1956 = vmatpush1.msra.mxu0 0.0
    %1957 = vmatprep.subr.mxu0 0.0
    %1958 = vmatpush1.msra.mxu0 0.0
    %1959 = vmatprep.subr.mxu0 0.0
    %1960 = vmatpush1.msra.mxu0 0.0
    %1961 = vmatprep.mubr.f32.mxu0 0.0
    %1962 = vmatmul.mubr.f32.gmra.mrb[0].mxu0 %v1895
    %v1963 = vpop.f32.mrb[0].mxu0
    %v1964 = vadd.f32 0.0, %v1963
    %v1965 = vpop.f32.mrb[0].mxu0
    %1966 = vdwg.mxu0
    %1969 = vrot.lane.b32.xlu0 %v1888, 16
    %v1970 = vpop.permute.xlu0 %1969
    %1971 = vrot.lane.b32.xlu0 %v1964, 16
    %v1972 = vpop.permute.xlu0 %1971
    %v1975 = vsel %vm151, %v1558, %v1970
    %v1976 = vsel %vm151, %v1634, %v1972
    %s1977 = scalar_lea.vmem %s4, 32
    %v1978 = vld [vmem:[%s1977] sm:$0xff]
    %v1979 = vld [vmem:[%s1977 + $0x8] sm:$0xff]
    %v1980 = vld [vmem:[%s1977 + $0x10] sm:$0xff]
    %v1981 = vld [vmem:[%s1977 + $0x18] sm:$0xff]
    %s1982 = scalar_lea.vmem %s8, 6
    %v1983 = vld [vmem:[%s1982] sm:$0x1]
    %v1985 = vlaneseq
    %v1986 = vshrl.u32 %v1985, 7
    %v1987 = vsub.s32 0, %v1986
    %v1988 = vrot.slane %v1983, %v1987
    %v1991 = vsel %vm54, %v1975, 0
    %v1994 = vsel %vm54, %v1976, 0
    %1996 = vmatprep.subr.mxu0 0.0
    %1997 = vmatpush1.msra.mxu0 %v1978
    %1998 = vmatprep.subr.mxu0 0.0
    %1999 = vmatpush1.msra.mxu0 %v1979
    %2000 = vmatprep.subr.mxu0 0.0
    %2001 = vmatpush1.msra.mxu0 %v1980
    %2002 = vmatprep.subr.mxu0 0.0
    %2003 = vmatpush1.msra.mxu0 %v1981
    %2004 = vmatprep.subr.mxu0 0.0
    %2005 = vmatpush1.msra.mxu0 0.0
    %2006 = vmatprep.subr.mxu0 0.0
    %2007 = vmatpush1.msra.mxu0 0.0
    %2008 = vmatprep.subr.mxu0 0.0
    %2009 = vmatpush1.msra.mxu0 0.0
    %2010 = vmatprep.subr.mxu0 0.0
    %2011 = vmatpush1.msra.mxu0 0.0
    %2012 = vmatprep.subr.mxu0 0.0
    %2013 = vmatpush1.msra.mxu0 0.0
    %2014 = vmatprep.subr.mxu0 0.0
    %2015 = vmatpush1.msra.mxu0 0.0
    %2016 = vmatprep.subr.mxu0 0.0
    %2017 = vmatpush1.msra.mxu0 0.0
    %2018 = vmatprep.subr.mxu0 0.0
    %2019 = vmatpush1.msra.mxu0 0.0
    %2020 = vmatprep.subr.mxu0 0.0
    %2021 = vmatpush1.msra.mxu0 0.0
    %2022 = vmatprep.subr.mxu0 0.0
    %2023 = vmatpush1.msra.mxu0 0.0
    %2024 = vmatprep.subr.mxu0 0.0
    %2025 = vmatpush1.msra.mxu0 0.0
    %2026 = vmatprep.subr.mxu0 0.0
    %2027 = vmatpush1.msra.mxu0 0.0
    %2028 = vmatprep.subr.mxu0 0.0
    %2029 = vmatpush1.msra.mxu0 0.0
    %2030 = vmatprep.subr.mxu0 0.0
    %2031 = vmatpush1.msra.mxu0 0.0
    %2032 = vmatprep.subr.mxu0 0.0
    %2033 = vmatpush1.msra.mxu0 0.0
    %2034 = vmatprep.subr.mxu0 0.0
    %2035 = vmatpush1.msra.mxu0 0.0
    %2036 = vmatprep.subr.mxu0 0.0
    %2037 = vmatpush1.msra.mxu0 0.0
    %2038 = vmatprep.subr.mxu0 0.0
    %2039 = vmatpush1.msra.mxu0 0.0
    %2040 = vmatprep.subr.mxu0 0.0
    %2041 = vmatpush1.msra.mxu0 0.0
    %2042 = vmatprep.subr.mxu0 0.0
    %2043 = vmatpush1.msra.mxu0 0.0
    %2044 = vmatprep.subr.mxu0 0.0
    %2045 = vmatpush1.msra.mxu0 0.0
    %2046 = vmatprep.subr.mxu0 0.0
    %2047 = vmatpush1.msra.mxu0 0.0
    %2048 = vmatprep.subr.mxu0 0.0
    %2049 = vmatpush1.msra.mxu0 0.0
    %2050 = vmatprep.subr.mxu0 0.0
    %2051 = vmatpush1.msra.mxu0 0.0
    %2052 = vmatprep.subr.mxu0 0.0
    %2053 = vmatpush1.msra.mxu0 0.0
    %2054 = vmatprep.subr.mxu0 0.0
    %2055 = vmatpush1.msra.mxu0 0.0
    %2056 = vmatprep.subr.mxu0 0.0
    %2057 = vmatpush1.msra.mxu0 0.0
    %2058 = vmatprep.subr.mxu0 0.0
    %2059 = vmatpush1.msra.mxu0 0.0
    %2060 = vmatprep.mubr.f32.mxu0 0.0
    %2061 = vmatmul.mubr.f32.gmra.mrb[0].mxu0 %v1991
    %v2062 = vpop.f32.mrb[0].mxu0
    %v2063 = vadd.f32 %v1988, %v2062
    %v2064 = vpop.f32.mrb[0].mxu0
    %2065 = vmatprep.mubr.f32.mxu0 0.0
    %2066 = vmatmul.mubr.f32.gmra.mrb[0].mxu0 %v1994
    %v2067 = vpop.f32.mrb[0].mxu0
    %v2068 = vadd.f32 %v1988, %v2067
    %v2069 = vpop.f32.mrb[0].mxu0
    %2070 = vdwg.mxu0
    %v2071 = vadd.f32 %v1213, %v2063
    %v2072 = vadd.f32 %v1214, %v2068
    %s2073 = scalar_lea.vmem %s8, 7
    %v2074 = vld [vmem:[%s2073] sm:$0x1]
    %s2075 = scalar_lea.vmem %s8, 8
    %v2076 = vld [vmem:[%s2075] sm:$0x1]
    %v2077 = vsel %vm54, %v2071, 0.0
    %2078 = vadd.xlane.f32.xlu0 %v2077
    %v2079 = vpop.xlane.xlu0 %2078
    %v2080 = vsel %vm54, %v2072, 0.0
    %2081 = vadd.xlane.f32.xlu0 %v2080
    %v2082 = vpop.xlane.xlu0 %2081
    %v2083 = vmul.f32 %v2079, %v922
    %v2084 = vmul.f32 %v2082, %v922
    %v2085 = vsub.f32 %v2071, %v2083
    %v2086 = vsub.f32 %v2072, %v2084
    %v2087 = vmul.f32 %v2085, %v2085
    %v2088 = vmul.f32 %v2086, %v2086
    %v2089 = vsel %vm54, %v2087, 0.0
    %2090 = vadd.xlane.f32.xlu0 %v2089
    %v2091 = vpop.xlane.xlu0 %2090
    %v2092 = vsel %vm54, %v2088, 0.0
    %2093 = vadd.xlane.f32.xlu0 %v2092
    %v2094 = vpop.xlane.xlu0 %2093
    %v2095 = vmul.f32 %v2091, %v922
    %v2096 = vmul.f32 %v2094, %v922
    %v2097 = vadd.f32 %v2095, 1e-12
    %v2098 = vadd.f32 %v2096, 1e-12
    %v2099 = vrsqrt.pop %v2097
    %v2100 = vrsqrt.pop %v2098
    %v2101 = vmul.f32 %v2085, %v2099
    %v2102 = vmul.f32 %v2086, %v2100
    %v2104 = vlaneseq
    %v2105 = vshrl.u32 %v2104, 7
    %v2106 = vsub.s32 0, %v2105
    %v2107 = vrot.slane %v2074, %v2106
    %v2109 = vmul.f32 %v2101, %v2107
    %v2110 = vmul.f32 %v2102, %v2107
    %v2112 = vlaneseq
    %v2113 = vshrl.u32 %v2112, 7
    %v2114 = vsub.s32 0, %v2113
    %v2115 = vrot.slane %v2076, %v2114
    %v2117 = vadd.f32 %v2109, %v2115
    %v2118 = vadd.f32 %v2110, %v2115
    %s2119 = scalar_lea.vmem %s5, 32
    %v2120 = vld [vmem:[%s2119] sm:$0xff]
    %v2121 = vld [vmem:[%s2119 + $0x8] sm:$0xff]
    %v2122 = vld [vmem:[%s2119 + $0x10] sm:$0xff]
    %v2123 = vld [vmem:[%s2119 + $0x18] sm:$0xff]
    %s2124 = scalar_lea.vmem %s6, 1
    %v2125 = vld [vmem:[%s2124] sm:$0x1]
    %v2127 = vlaneseq
    %v2128 = vshrl.u32 %v2127, 7
    %v2129 = vsub.s32 0, %v2128
    %v2130 = vrot.slane %v2125, %v2129
    %v2133 = vsel %vm54, %v2117, 0
    %v2136 = vsel %vm54, %v2118, 0
    %2138 = vmatprep.subr.mxu0 0.0
    %2139 = vmatpush1.msra.mxu0 %v2120
    %2140 = vmatprep.subr.mxu0 0.0
    %2141 = vmatpush1.msra.mxu0 %v2121
    %2142 = vmatprep.subr.mxu0 0.0
    %2143 = vmatpush1.msra.mxu0 %v2122
    %2144 = vmatprep.subr.mxu0 0.0
    %2145 = vmatpush1.msra.mxu0 %v2123
    %2146 = vmatprep.subr.mxu0 0.0
    %2147 = vmatpush1.msra.mxu0 0.0
    %2148 = vmatprep.subr.mxu0 0.0
    %2149 = vmatpush1.msra.mxu0 0.0
    %2150 = vmatprep.subr.mxu0 0.0
    %2151 = vmatpush1.msra.mxu0 0.0
    %2152 = vmatprep.subr.mxu0 0.0
    %2153 = vmatpush1.msra.mxu0 0.0
    %2154 = vmatprep.subr.mxu0 0.0
    %2155 = vmatpush1.msra.mxu0 0.0
    %2156 = vmatprep.subr.mxu0 0.0
    %2157 = vmatpush1.msra.mxu0 0.0
    %2158 = vmatprep.subr.mxu0 0.0
    %2159 = vmatpush1.msra.mxu0 0.0
    %2160 = vmatprep.subr.mxu0 0.0
    %2161 = vmatpush1.msra.mxu0 0.0
    %2162 = vmatprep.subr.mxu0 0.0
    %2163 = vmatpush1.msra.mxu0 0.0
    %2164 = vmatprep.subr.mxu0 0.0
    %2165 = vmatpush1.msra.mxu0 0.0
    %2166 = vmatprep.subr.mxu0 0.0
    %2167 = vmatpush1.msra.mxu0 0.0
    %2168 = vmatprep.subr.mxu0 0.0
    %2169 = vmatpush1.msra.mxu0 0.0
    %2170 = vmatprep.subr.mxu0 0.0
    %2171 = vmatpush1.msra.mxu0 0.0
    %2172 = vmatprep.subr.mxu0 0.0
    %2173 = vmatpush1.msra.mxu0 0.0
    %2174 = vmatprep.subr.mxu0 0.0
    %2175 = vmatpush1.msra.mxu0 0.0
    %2176 = vmatprep.subr.mxu0 0.0
    %2177 = vmatpush1.msra.mxu0 0.0
    %2178 = vmatprep.subr.mxu0 0.0
    %2179 = vmatpush1.msra.mxu0 0.0
    %2180 = vmatprep.subr.mxu0 0.0
    %2181 = vmatpush1.msra.mxu0 0.0
    %2182 = vmatprep.subr.mxu0 0.0
    %2183 = vmatpush1.msra.mxu0 0.0
    %2184 = vmatprep.subr.mxu0 0.0
    %2185 = vmatpush1.msra.mxu0 0.0
    %2186 = vmatprep.subr.mxu0 0.0
    %2187 = vmatpush1.msra.mxu0 0.0
    %2188 = vmatprep.subr.mxu0 0.0
    %2189 = vmatpush1.msra.mxu0 0.0
    %2190 = vmatprep.subr.mxu0 0.0
    %2191 = vmatpush1.msra.mxu0 0.0
    %2192 = vmatprep.subr.mxu0 0.0
    %2193 = vmatpush1.msra.mxu0 0.0
    %2194 = vmatprep.subr.mxu0 0.0
    %2195 = vmatpush1.msra.mxu0 0.0
    %2196 = vmatprep.subr.mxu0 0.0
    %2197 = vmatpush1.msra.mxu0 0.0
    %2198 = vmatprep.subr.mxu0 0.0
    %2199 = vmatpush1.msra.mxu0 0.0
    %2200 = vmatprep.subr.mxu0 0.0
    %2201 = vmatpush1.msra.mxu0 0.0
    %2202 = vmatprep.mubr.f32.mxu0 0.0
    %2203 = vmatmul.mubr.f32.gmra.mrb[0].mxu0 %v2133
    %v2204 = vpop.f32.mrb[0].mxu0
    %v2205 = vadd.f32 %v2130, %v2204
    %v2206 = vpop.f32.mrb[0].mxu0
    %2207 = vmatprep.mubr.f32.mxu0 0.0
    %2208 = vmatmul.mubr.f32.gmra.mrb[0].mxu0 %v2136
    %v2209 = vpop.f32.mrb[0].mxu0
    %v2210 = vadd.f32 %v2130, %v2209
    %v2211 = vpop.f32.mrb[0].mxu0
    %2212 = vdwg.mxu0
    %v2213 = vmul.f32 %v2205, 0.5
    %v2214 = vmul.f32 %v2210, 0.5
    %v2215 = vmul.f32 %v2205, 0.044715
    %v2216 = vmul.f32 %v2210, 0.044715
    %v2217 = vmul.f32 %v2215, %v2205
    %v2218 = vmul.f32 %v2216, %v2210
    %v2219 = vmul.f32 %v2217, %v2205
    %v2220 = vmul.f32 %v2218, %v2210
    %v2221 = vadd.f32 %v2205, %v2219
    %v2222 = vadd.f32 %v2210, %v2220
    %v2223 = vmul.f32 %v2221, 0.7978846
    %v2224 = vmul.f32 %v2222, 0.7978846
    %v2225 = vtanh.pop %v2223
    %v2226 = vtanh.pop %v2224
    %v2227 = vadd.f32 %v2225, 1.0
    %v2228 = vadd.f32 %v2226, 1.0
    %v2229 = vmul.f32 %v2213, %v2227
    %v2230 = vmul.f32 %v2214, %v2228
    %s2231 = scalar_lea.vmem %s7, 64
    %v2232 = vld [vmem:[%s2231] sm:$0xff]
    %v2233 = vld [vmem:[%s2231 + $0x8] sm:$0xff]
    %v2234 = vld [vmem:[%s2231 + $0x10] sm:$0xff]
    %v2235 = vld [vmem:[%s2231 + $0x18] sm:$0xff]
    %v2236 = vld [vmem:[%s2231 + $0x20] sm:$0xff]
    %v2237 = vld [vmem:[%s2231 + $0x28] sm:$0xff]
    %v2238 = vld [vmem:[%s2231 + $0x30] sm:$0xff]
    %v2239 = vld [vmem:[%s2231 + $0x38] sm:$0xff]
    %s2240 = scalar_lea.vmem %s8, 9
    %v2241 = vld [vmem:[%s2240] sm:$0x1]
    %v2243 = vlaneseq
    %v2244 = vshrl.u32 %v2243, 7
    %v2245 = vsub.s32 0, %v2244
    %v2246 = vrot.slane %v2241, %v2245
    %v2249 = vsel %vm1085, %v2229, 0
    %v2252 = vsel %vm1085, %v2230, 0
    %2254 = vmatprep.subr.mxu0 0.0
    %2255 = vmatpush1.msra.mxu0 %v2232
    %2256 = vmatprep.subr.mxu0 0.0
    %2257 = vmatpush1.msra.mxu0 %v2233
    %2258 = vmatprep.subr.mxu0 0.0
    %2259 = vmatpush1.msra.mxu0 %v2234
    %2260 = vmatprep.subr.mxu0 0.0
    %2261 = vmatpush1.msra.mxu0 %v2235
    %2262 = vmatprep.subr.mxu0 0.0
    %2263 = vmatpush1.msra.mxu0 %v2236
    %2264 = vmatprep.subr.mxu0 0.0
    %2265 = vmatpush1.msra.mxu0 %v2237
    %2266 = vmatprep.subr.mxu0 0.0
    %2267 = vmatpush1.msra.mxu0 %v2238
    %2268 = vmatprep.subr.mxu0 0.0
    %2269 = vmatpush1.msra.mxu0 %v2239
    %2270 = vmatprep.subr.mxu0 0.0
    %2271 = vmatpush1.msra.mxu0 0.0
    %2272 = vmatprep.subr.mxu0 0.0
    %2273 = vmatpush1.msra.mxu0 0.0
    %2274 = vmatprep.subr.mxu0 0.0
    %2275 = vmatpush1.msra.mxu0 0.0
    %2276 = vmatprep.subr.mxu0 0.0
    %2277 = vmatpush1.msra.mxu0 0.0
    %2278 = vmatprep.subr.mxu0 0.0
    %2279 = vmatpush1.msra.mxu0 0.0
    %2280 = vmatprep.subr.mxu0 0.0
    %2281 = vmatpush1.msra.mxu0 0.0
    %2282 = vmatprep.subr.mxu0 0.0
    %2283 = vmatpush1.msra.mxu0 0.0
    %2284 = vmatprep.subr.mxu0 0.0
    %2285 = vmatpush1.msra.mxu0 0.0
    %2286 = vmatprep.subr.mxu0 0.0
    %2287 = vmatpush1.msra.mxu0 0.0
    %2288 = vmatprep.subr.mxu0 0.0
    %2289 = vmatpush1.msra.mxu0 0.0
    %2290 = vmatprep.subr.mxu0 0.0
    %2291 = vmatpush1.msra.mxu0 0.0
    %2292 = vmatprep.subr.mxu0 0.0
    %2293 = vmatpush1.msra.mxu0 0.0
    %2294 = vmatprep.subr.mxu0 0.0
    %2295 = vmatpush1.msra.mxu0 0.0
    %2296 = vmatprep.subr.mxu0 0.0
    %2297 = vmatpush1.msra.mxu0 0.0
    %2298 = vmatprep.subr.mxu0 0.0
    %2299 = vmatpush1.msra.mxu0 0.0
    %2300 = vmatprep.subr.mxu0 0.0
    %2301 = vmatpush1.msra.mxu0 0.0
    %2302 = vmatprep.subr.mxu0 0.0
    %2303 = vmatpush1.msra.mxu0 0.0
    %2304 = vmatprep.subr.mxu0 0.0
    %2305 = vmatpush1.msra.mxu0 0.0
    %2306 = vmatprep.subr.mxu0 0.0
    %2307 = vmatpush1.msra.mxu0 0.0
    %2308 = vmatprep.subr.mxu0 0.0
    %2309 = vmatpush1.msra.mxu0 0.0
    %2310 = vmatprep.subr.mxu0 0.0
    %2311 = vmatpush1.msra.mxu0 0.0
    %2312 = vmatprep.subr.mxu0 0.0
    %2313 = vmatpush1.msra.mxu0 0.0
    %2314 = vmatprep.subr.mxu0 0.0
    %2315 = vmatpush1.msra.mxu0 0.0
    %2316 = vmatprep.subr.mxu0 0.0
    %2317 = vmatpush1.msra.mxu0 0.0
    %2318 = vmatprep.mubr.f32.mxu0 0.0
    %2319 = vmatmul.mubr.f32.gmra.mrb[0].mxu0 %v2249
    %v2320 = vpop.f32.mrb[0].mxu0
    %v2321 = vadd.f32 %v2246, %v2320
    %v2322 = vpop.f32.mrb[0].mxu0
    %2323 = vmatprep.mubr.f32.mxu0 0.0
    %2324 = vmatmul.mubr.f32.gmra.mrb[0].mxu0 %v2252
    %v2325 = vpop.f32.mrb[0].mxu0
    %v2326 = vadd.f32 %v2246, %v2325
    %v2327 = vpop.f32.mrb[0].mxu0
    %2328 = vdwg.mxu0
    %v2329 = vadd.f32 %v2117, %v2321
    %v2330 = vadd.f32 %v2118, %v2326
    %s2331 = scalar_lea.vmem %s8, 10
    %v2332 = vld [vmem:[%s2331] sm:$0x1]
    %s2333 = scalar_lea.vmem %s8, 11
    %v2334 = vld [vmem:[%s2333] sm:$0x1]
    %v2335 = vsel %vm54, %v2329, 0.0
    %2336 = vadd.xlane.f32.xlu0 %v2335
    %v2337 = vpop.xlane.xlu0 %2336
    %v2338 = vsel %vm54, %v2330, 0.0
    %2339 = vadd.xlane.f32.xlu0 %v2338
    %v2340 = vpop.xlane.xlu0 %2339
    %v2341 = vmul.f32 %v2337, %v922
    %v2342 = vmul.f32 %v2340, %v922
    %v2343 = vsub.f32 %v2329, %v2341
    %v2344 = vsub.f32 %v2330, %v2342
    %v2345 = vmul.f32 %v2343, %v2343
    %v2346 = vmul.f32 %v2344, %v2344
    %v2347 = vsel %vm54, %v2345, 0.0
    %2348 = vadd.xlane.f32.xlu0 %v2347
    %v2349 = vpop.xlane.xlu0 %2348
    %v2350 = vsel %vm54, %v2346, 0.0
    %2351 = vadd.xlane.f32.xlu0 %v2350
    %v2352 = vpop.xlane.xlu0 %2351
    %v2353 = vmul.f32 %v2349, %v922
    %v2354 = vmul.f32 %v2352, %v922
    %v2355 = vadd.f32 %v2353, 1e-12
    %v2356 = vadd.f32 %v2354, 1e-12
    %v2357 = vrsqrt.pop %v2355
    %v2358 = vrsqrt.pop %v2356
    %v2359 = vmul.f32 %v2343, %v2357
    %v2360 = vmul.f32 %v2344, %v2358
    %v2362 = vlaneseq
    %v2363 = vshrl.u32 %v2362, 7
    %v2364 = vsub.s32 0, %v2363
    %v2365 = vrot.slane %v2332, %v2364
    %v2367 = vmul.f32 %v2359, %v2365
    %v2368 = vmul.f32 %v2360, %v2365
    %v2370 = vlaneseq
    %v2371 = vshrl.u32 %v2370, 7
    %v2372 = vsub.s32 0, %v2371
    %v2373 = vrot.slane %v2334, %v2372
    %v2375 = vadd.f32 %v2367, %v2373
    %v2376 = vadd.f32 %v2368, %v2373
    %v2377 = vsel %vm54, %v2375, 0.0
    %v2378 = vrot.slane %v2377, 4
    %v2379 = vadd.f32 %v2377, %v2378
    %v2380 = vrot.slane %v2379, 2
    %v2381 = vadd.f32 %v2379, %v2380
    %v2382 = vrot.slane %v2381, 1
    %v2383 = vadd.f32 %v2381, %v2382
    %v2384 = vsel %vm54, %v2376, 0.0
    %v2385 = vrot.slane %v2384, 4
    %v2386 = vadd.f32 %v2384, %v2385
    %v2387 = vrot.slane %v2386, 2
    %v2388 = vadd.f32 %v2386, %v2387
    %v2389 = vrot.slane %v2388, 1
    %v2390 = vadd.f32 %v2388, %v2389
    %v2391 = vrcp.pop 8.0
    %v2392 = vmul.f32 %v2383, %v2391
    %v2393 = vmul.f32 %v2390, %v2391
    %v2394 = vld [vmem:[%s9] sm:$0xff]
    %v2395 = vld [vmem:[%s9 + $0x8] sm:$0xff]
    %v2396 = vld [vmem:[%s9 + $0x10] sm:$0xff]
    %v2397 = vld [vmem:[%s9 + $0x18] sm:$0xff]
    %v2398 = vld [vmem:[%s10] sm:$0x1]
    %v2400 = vlaneseq
    %v2401 = vshrl.u32 %v2400, 7
    %v2402 = vsub.s32 0, %v2401
    %v2403 = vrot.slane %v2398, %v2402
    %vm2407 = vcmask 1041409
    %v2408 = vsel %vm2407, %v2393, %v2392
    %v2409 = vsel %vm54, %v2408, 0
    %2411 = vmatprep.subr.mxu0 0.0
    %2412 = vmatpush1.msra.mxu0 %v2394
    %2413 = vmatprep.subr.mxu0 0.0
    %2414 = vmatpush1.msra.mxu0 %v2395
    %2415 = vmatprep.subr.mxu0 0.0
    %2416 = vmatpush1.msra.mxu0 %v2396
    %2417 = vmatprep.subr.mxu0 0.0
    %2418 = vmatpush1.msra.mxu0 %v2397
    %2419 = vmatprep.subr.mxu0 0.0
    %2420 = vmatpush1.msra.mxu0 0.0
    %2421 = vmatprep.subr.mxu0 0.0
    %2422 = vmatpush1.msra.mxu0 0.0
    %2423 = vmatprep.subr.mxu0 0.0
    %2424 = vmatpush1.msra.mxu0 0.0
    %2425 = vmatprep.subr.mxu0 0.0
    %2426 = vmatpush1.msra.mxu0 0.0
    %2427 = vmatprep.subr.mxu0 0.0
    %2428 = vmatpush1.msra.mxu0 0.0
    %2429 = vmatprep.subr.mxu0 0.0
    %2430 = vmatpush1.msra.mxu0 0.0
    %2431 = vmatprep.subr.mxu0 0.0
    %2432 = vmatpush1.msra.mxu0 0.0
    %2433 = vmatprep.subr.mxu0 0.0
    %2434 = vmatpush1.msra.mxu0 0.0
    %2435 = vmatprep.subr.mxu0 0.0
    %2436 = vmatpush1.msra.mxu0 0.0
    %2437 = vmatprep.subr.mxu0 0.0
    %2438 = vmatpush1.msra.mxu0 0.0
    %2439 = vmatprep.subr.mxu0 0.0
    %2440 = vmatpush1.msra.mxu0 0.0
    %2441 = vmatprep.subr.mxu0 0.0
    %2442 = vmatpush1.msra.mxu0 0.0
    %2443 = vmatprep.subr.mxu0 0.0
    %2444 = vmatpush1.msra.mxu0 0.0
    %2445 = vmatprep.subr.mxu0 0.0
    %2446 = vmatpush1.msra.mxu0 0.0
    %2447 = vmatprep.subr.mxu0 0.0
    %2448 = vmatpush1.msra.mxu0 0.0
    %2449 = vmatprep.subr.mxu0 0.0
    %2450 = vmatpush1.msra.mxu0 0.0
    %2451 = vmatprep.subr.mxu0 0.0
    %2452 = vmatpush1.msra.mxu0 0.0
    %2453 = vmatprep.subr.mxu0 0.0
    %2454 = vmatpush1.msra.mxu0 0.0
    %2455 = vmatprep.subr.mxu0 0.0
    %2456 = vmatpush1.msra.mxu0 0.0
    %2457 = vmatprep.subr.mxu0 0.0
    %2458 = vmatpush1.msra.mxu0 0.0
    %2459 = vmatprep.subr.mxu0 0.0
    %2460 = vmatpush1.msra.mxu0 0.0
    %2461 = vmatprep.subr.mxu0 0.0
    %2462 = vmatpush1.msra.mxu0 0.0
    %2463 = vmatprep.subr.mxu0 0.0
    %2464 = vmatpush1.msra.mxu0 0.0
    %2465 = vmatprep.subr.mxu0 0.0
    %2466 = vmatpush1.msra.mxu0 0.0
    %2467 = vmatprep.subr.mxu0 0.0
    %2468 = vmatpush1.msra.mxu0 0.0
    %2469 = vmatprep.subr.mxu0 0.0
    %2470 = vmatpush1.msra.mxu0 0.0
    %2471 = vmatprep.subr.mxu0 0.0
    %2472 = vmatpush1.msra.mxu0 0.0
    %2473 = vmatprep.subr.mxu0 0.0
    %2474 = vmatpush1.msra.mxu0 0.0
    %2475 = vmatprep.mubr.f32.mxu0 0.0
    %2476 = vmatmul.mubr.f32.gmra.mrb[0].mxu0 %v2409
    %v2477 = vpop.f32.mrb[0].mxu0
    %v2478 = vadd.f32 %v2403, %v2477
    %v2479 = vpop.f32.mrb[0].mxu0
    %2480 = vdwg.mxu0
    %2481 = vst [vmem:[#allocation2] sm:$0x3] %v2478
    // Predicated region
    $region46: #{forward.1} parent=1 // pred_check
      _
    $region47: #{forward.1} parent=1 // pred_check_branch
      %2483 = sbr.rel (0) target = $region49
    $region48: #{forward.1} parent=1 // pred_region
      %s2485 = ssub.s32 32, 32
      %2486 = vsyncadd [#allocation3], %s2485
      %s2488 = sshll.u32 [#allocation2], 4
      %s2489 = int_to_ptr.vmem [resolvable:$true] %s2488
      %2491 = dma.vmem_to_hbm [thread:$0]  %s2489, 32, %s11, [#allocation3]
    $region49: #{forward.1} parent=1 // pred_fallthru
      _
    // Predicated region
    $region50: #{forward.1} parent=1 // pred_check
      _
    $region51: #{forward.1} parent=1 // pred_check_branch
      %2493 = sbr.rel (0) target = $region53
    $region52: #{forward.1} parent=1 // pred_region
      %2494 = dma.done [#allocation3], 32
    $region53: #{forward.1} parent=1 // pred_fallthru
      _
    %2495 = vsyncpa [#allocation3], 1

</llo_original>
